<compile_context>
chip_gen: v7x
topology: tpu7x:2x2x1
jax: 0.10.0
libtpu: 0.0.40
codegen_flags: <defaults>
</compile_context>

<pallas_src>
import jax
import jax.numpy as jnp
from jax.experimental import pallas as pl
from jax.experimental.pallas import tpu as pltpu


# ----------------------------------------------------------------------------
# Fused Pallas kernel
# ----------------------------------------------------------------------------
def make_fused_kernel(num_gru_layers):
    """Builds the fused forward kernel.

    Ref layout (all VMEM, full-array blocks):
      x_ref      : [T, I]        x[S-1]  (GRU runs only on the consumed row)
      static_ref : [B, Ss]
      per GRU layer l (3 refs): wi_l [3, in_l, H], wh_l [3, H, H], b_l [4, 1, H]
                                (gate order r, z, n; b_l = [b_ir+b_hr,
                                 b_iz+b_hz, b_in, b_hn])
      FNN (6 refs): wf1 [Ss,Fh], bf1 [1,Fh], wf2 [Fh,Fh], bf2 [1,Fh],
                    wf3 [Fh,M2], bf3 [1,M2]
      BNN (9 refs): wa [H1,Bh], wb [M2,Bh], bb1 [1,Bh],
                    wb2 [Bh,Bh], bb2, wb3 [Bh,Bh], bb3, wb4 [Bh,O], bb4 [1,O]
      o_ref      : [B, O]
    """

    def kernel(*refs):
        x_ref, static_ref = refs[0], refs[1]
        idx = 2
        gru_refs = []
        for _ in range(num_gru_layers):
            gru_refs.append((refs[idx], refs[idx + 1], refs[idx + 2]))
            idx += 3
        fnn_refs = refs[idx:idx + 6]
        idx += 6
        bnn_refs = refs[idx:idx + 9]
        idx += 9
        o_ref = refs[idx]

        f32 = jnp.float32

        # ------------------- GRU stack (single gru-batch row, N = 1) --------
        T = x_ref.shape[0]
        seq = x_ref[...]                                   # [T, in0]
        for wi_ref, wh_ref, b_ref in gru_refs:
            H = wh_ref.shape[-1]
            w_ir, w_iz, w_in = wi_ref[0], wi_ref[1], wi_ref[2]   # [in, H]
            w_hr, w_hz, w_hn = wh_ref[0], wh_ref[1], wh_ref[2]   # [H, H]
            b_r, b_z, b_n_i, b_n_h = b_ref[0], b_ref[1], b_ref[2], b_ref[3]

            # Hoisted input projections: one MXU op per gate over all T steps.
            pre_r = jnp.dot(seq, w_ir, preferred_element_type=f32) + b_r
            pre_z = jnp.dot(seq, w_iz, preferred_element_type=f32) + b_z
            pre_n = jnp.dot(seq, w_in, preferred_element_type=f32) + b_n_i

            h = jnp.zeros((1, H), f32)
            hs = []
            # Fully unrolled recurrence (T is small & static); only the
            # h @ W_h* matmuls + gate math are on the serial chain.
            for t in range(T):
                hr = jnp.dot(h, w_hr, preferred_element_type=f32)
                hz = jnp.dot(h, w_hz, preferred_element_type=f32)
                hn = jnp.dot(h, w_hn, preferred_element_type=f32) + b_n_h
                r = jax.nn.sigmoid(pre_r[t:t + 1, :] + hr)
                z = jax.nn.sigmoid(pre_z[t:t + 1, :] + hz)
                n = jnp.tanh(pre_n[t:t + 1, :] + r * hn)
                h = (1.0 - z) * n + z * h
                hs.append(h)
            seq = jnp.concatenate(hs, axis=0)              # [T, H]

        gru_last = seq                                     # == output[-1,:,:]

        # ------------------- Static-feature FNN -----------------------------
        wf1, bf1, wf2, bf2, wf3, bf3 = fnn_refs
        s = static_ref[...]
        s = jnp.maximum(
            jnp.dot(s, wf1[...], preferred_element_type=f32) + bf1[...], 0.0)
        s = jnp.maximum(
            jnp.dot(s, wf2[...], preferred_element_type=f32) + bf2[...], 0.0)
        fnn_out = jnp.dot(s, wf3[...], preferred_element_type=f32) + bf3[...]

        # ------------------- Bayesian 4-layer head (concat eliminated) ------
        wa, wb, bb1, wb2, bb2, wb3, bb3, wb4, bb4 = bnn_refs
        h1 = (jnp.dot(gru_last, wa[...], preferred_element_type=f32)
              + jnp.dot(fnn_out, wb[...], preferred_element_type=f32)
              + bb1[...])
        h1 = jnp.maximum(h1, 0.0)
        h2 = jnp.maximum(
            jnp.dot(h1, wb2[...], preferred_element_type=f32) + bb2[...], 0.0)
        h3 = jnp.maximum(
            jnp.dot(h2, wb3[...], preferred_element_type=f32) + bb3[...], 0.0)
        o_ref[...] = (jnp.dot(h3, wb4[...], preferred_element_type=f32)
                      + bb4[...])

    return kernel


# ----------------------------------------------------------------------------
# Wrapper glue (layout plumbing only — runs as tiny XLA ops under jit)
# ----------------------------------------------------------------------------
_VMEM_SPEC = pl.BlockSpec(memory_space=pltpu.MemorySpace.VMEM)


def _split_gru_layer(w_ih, w_hh, b_ih, b_hh):
    """PyTorch [3H, in] / [3H, H] (gate order r, z, n) -> per-gate, pre-T."""
    H = w_hh.shape[1]
    w_ir, w_iz, w_in = w_ih[:H], w_ih[H:2 * H], w_ih[2 * H:]
    w_hr, w_hz, w_hn = w_hh[:H], w_hh[H:2 * H], w_hh[2 * H:]
    b_ir, b_iz, b_in = b_ih[:H], b_ih[H:2 * H], b_ih[2 * H:]
    b_hr, b_hz, b_hn = b_hh[:H], b_hh[H:2 * H], b_hh[2 * H:]
    wi = jnp.stack([w_ir.T, w_iz.T, w_in.T])               # [3, in, H]
    wh = jnp.stack([w_hr.T, w_hz.T, w_hn.T])               # [3, H, H]
    b = jnp.stack([(b_ir + b_hr)[None, :],
                   (b_iz + b_hz)[None, :],
                   b_in[None, :],
                   b_hn[None, :]])                          # [4, 1, H]
    return wi, wh, b


def sample_bnn_weights(params):
    """weight = mu + softplus(rho) * eps  (reparameterization trick)."""
    ws, bs = [], []
    for (w_mu, w_rho, b_mu, b_rho), (eps_w, eps_b) in zip(params["bnn"],
                                                          params["bnn_eps"]):
        ws.append(w_mu + jax.nn.softplus(w_rho) * eps_w)
        bs.append(b_mu + jax.nn.softplus(b_rho) * eps_b)
    return ws, bs


@jax.jit
def forward_pallas(x, static_input, params):
    """x: [S, B, input_size], static_input: [B, static_input_size]."""
    S, B, _ = x.shape
    H1 = params["gru"][0][1].shape[1]
    out_dim = params["bnn"][-1][0].shape[0]

    # nn.GRU(batch_first=True) on x:[S,B,I]: dim 0 is the GRU "batch", dim 1 is
    # "time".  Only output[-1,:,:] (gru-batch row S-1) is used downstream, and
    # gru-batch rows are independent, so feed the kernel just that row.
    x_last = x[S - 1]                                       # [T=B, input_size]

    args = [x_last, static_input]

    # GRU: per-gate, pre-transposed, bias-folded blocks.
    for (w_ih, w_hh, b_ih, b_hh) in params["gru"]:
        args.extend(_split_gru_layer(w_ih, w_hh, b_ih, b_hh))

    # FNN static encoder: pre-transposed weights, [1, out] biases.
    for w, b in zip(params["fnn_w"], params["fnn_b"]):
        args.append(w.T)
        args.append(b.reshape(1, -1))

    # Bayesian head: sample weights, pre-transpose, split layer 1 to kill the
    # concat inside the kernel.
    bw, bb = sample_bnn_weights(params)
    w1t = bw[0].T                                           # [H1+M2, Bh]
    args.extend([w1t[:H1], w1t[H1:], bb[0].reshape(1, -1)])
    for w, b in zip(bw[1:], bb[1:]):
        args.append(w.T)
        args.append(b.reshape(1, -1))

    kernel = make_fused_kernel(len(params["gru"]))
    return pl.pallas_call(
        kernel,
        out_shape=jax.ShapeDtypeStruct((B, out_dim), jnp.float32),
        in_specs=[_VMEM_SPEC] * len(args),
        out_specs=_VMEM_SPEC,
    )(*args)


# ----------------------------------------------------------------------------
# Parameter construction (PyTorch-style init) + pure-JAX reference
# ----------------------------------------------------------------------------
def init_params(key, input_size, mid_size1, mid_size2, output_size, num_layers,
                static_input_size, fnn_hidden_size, bnn_hidden_size):
    keys = iter(jax.random.split(key, 64))

    def unif(shape, lo, hi):
        return jax.random.uniform(next(keys), shape, jnp.float32, lo, hi)

    params = {}

    # GRU: U(-1/sqrt(H), 1/sqrt(H)), gate order (r, z, n).
    k = 1.0 / jnp.sqrt(mid_size1)
    gru = []
    for layer in range(num_layers):
        in_dim = input_size if layer == 0 else mid_size1
        gru.append((
            unif((3 * mid_size1, in_dim), -k, k),
            unif((3 * mid_size1, mid_size1), -k, k),
            unif((3 * mid_size1,), -k, k),
            unif((3 * mid_size1,), -k, k),
        ))
    params["gru"] = gru

    # FNN: Linear -> ReLU -> Linear -> ReLU -> Linear
    def linear_init(out_f, in_f):
        b = 1.0 / jnp.sqrt(in_f)
        return unif((out_f, in_f), -b, b), unif((out_f,), -b, b)

    fnn_dims = [(fnn_hidden_size, static_input_size),
                (fnn_hidden_size, fnn_hidden_size),
                (mid_size2, fnn_hidden_size)]
    fnn_w, fnn_b = [], []
    for o, i in fnn_dims:
        w, b = linear_init(o, i)
        fnn_w.append(w)
        fnn_b.append(b)
    params["fnn_w"], params["fnn_b"] = fnn_w, fnn_b

    # BayesianFNN4Layer: mu ~ U(-0.2, 0.2), rho ~ U(-5, -4); deterministic eps.
    bnn_dims = [(bnn_hidden_size, mid_size1 + mid_size2),
                (bnn_hidden_size, bnn_hidden_size),
                (bnn_hidden_size, bnn_hidden_size),
                (output_size, bnn_hidden_size)]
    bnn, bnn_eps = [], []
    for o, i in bnn_dims:
        bnn.append((unif((o, i), -0.2, 0.2), unif((o, i), -5.0, -4.0),
                    unif((o,), -0.2, 0.2), unif((o,), -5.0, -4.0)))
        bnn_eps.append((jax.random.normal(next(keys), (o, i), jnp.float32),
                        jax.random.normal(next(keys), (o,), jnp.float32)))
    params["bnn"] = bnn
    params["bnn_eps"] = bnn_eps
    return params


def forward_reference(x, static_input, params):
    """Pure-JAX reference mirroring the PyTorch forward exactly (full GRU)."""
    S, B, _ = x.shape
    x_tm = jnp.transpose(x, (1, 0, 2))          # time-major [T=B, N=S, I]
    h_seq = x_tm
    for (w_ih, w_hh, b_ih, b_hh) in params["gru"]:
        T, N, _ = h_seq.shape
        H = w_hh.shape[1]

        def step(h, x_t, w_ih=w_ih, w_hh=w_hh, b_ih=b_ih, b_hh=b_hh, H=H):
            gi = x_t @ w_ih.T + b_ih
            gh = h @ w_hh.T + b_hh
            i_r, i_z, i_n = gi[:, :H], gi[:, H:2 * H], gi[:, 2 * H:]
            h_r, h_z, h_n = gh[:, :H], gh[:, H:2 * H], gh[:, 2 * H:]
            r = jax.nn.sigmoid(i_r + h_r)
            z = jax.nn.sigmoid(i_z + h_z)
            n = jnp.tanh(i_n + r * h_n)
            h_new = (1.0 - z) * n + z * h
            return h_new, h_new

        _, h_seq = jax.lax.scan(step, jnp.zeros((N, H), jnp.float32), h_seq)
    gru_last = h_seq[:, S - 1, :]               # == PyTorch output[-1, :, :]

    h = static_input
    for i, (w, b) in enumerate(zip(params["fnn_w"], params["fnn_b"])):
        h = h @ w.T + b
        if i < 2:
            h = jnp.maximum(h, 0.0)
    combined = jnp.concatenate([gru_last, h], axis=1)

    bw, bb = sample_bnn_weights(params)
    h = combined
    for i, (w, b) in enumerate(zip(bw, bb)):
        h = h @ w.T + b
        if i < 3:
            h = jnp.maximum(h, 0.0)
    return h


# ----------------------------------------------------------------------------
if __name__ == "__main__":
    input_size = 8
    mid_size1 = 16
    mid_size2 = 16
    output_size = 4
    num_layers = 2
    static_input_size = 8
    fnn_hidden_size = 32
    bnn_hidden_size = 32

    seq_len = 4   # dim 0 of x
    batch = 2     # dim 1 of x, and batch of static_input

    root = jax.random.PRNGKey(0)
    k_params, k_x, k_s = jax.random.split(root, 3)

    params = init_params(k_params, input_size, mid_size1, mid_size2,
                         output_size, num_layers, static_input_size,
                         fnn_hidden_size, bnn_hidden_size)

    x = jax.random.normal(k_x, (seq_len, batch, input_size), jnp.float32)
    static_input = jax.random.normal(k_s, (batch, static_input_size),
                                     jnp.float32)

    out = forward_pallas(x, static_input, params)
    out = jax.block_until_ready(out)

    ref = forward_reference(x, static_input, params)
    assert out.shape == (batch, output_size), out.shape
    assert jnp.allclose(out, ref, rtol=1e-3, atol=1e-3), (
        f"max abs err {jnp.max(jnp.abs(out - ref))}")

    print("KERNEL_OK")
</pallas_src>

<mosaic_0001>
module attributes {stable_mosaic.version = 11 : i64} {
  func.func @kernel(%arg0: memref<2x8xf32, #tpu.memory_space<vmem>>, %arg1: memref<2x8xf32, #tpu.memory_space<vmem>>, %arg2: memref<3x8x16xf32, #tpu.memory_space<vmem>>, %arg3: memref<3x16x16xf32, #tpu.memory_space<vmem>>, %arg4: memref<4x1x16xf32, #tpu.memory_space<vmem>>, %arg5: memref<3x16x16xf32, #tpu.memory_space<vmem>>, %arg6: memref<3x16x16xf32, #tpu.memory_space<vmem>>, %arg7: memref<4x1x16xf32, #tpu.memory_space<vmem>>, %arg8: memref<8x32xf32, #tpu.memory_space<vmem>>, %arg9: memref<1x32xf32, #tpu.memory_space<vmem>>, %arg10: memref<32x32xf32, #tpu.memory_space<vmem>>, %arg11: memref<1x32xf32, #tpu.memory_space<vmem>>, %arg12: memref<32x16xf32, #tpu.memory_space<vmem>>, %arg13: memref<1x16xf32, #tpu.memory_space<vmem>>, %arg14: memref<16x32xf32, #tpu.memory_space<vmem>>, %arg15: memref<16x32xf32, #tpu.memory_space<vmem>>, %arg16: memref<1x32xf32, #tpu.memory_space<vmem>>, %arg17: memref<32x32xf32, #tpu.memory_space<vmem>>, %arg18: memref<1x32xf32, #tpu.memory_space<vmem>>, %arg19: memref<32x32xf32, #tpu.memory_space<vmem>>, %arg20: memref<1x32xf32, #tpu.memory_space<vmem>>, %arg21: memref<32x4xf32, #tpu.memory_space<vmem>>, %arg22: memref<1x4xf32, #tpu.memory_space<vmem>>, %arg23: memref<2x4xf32, #tpu.memory_space<vmem>>) attributes {dimension_semantics = [], scalar_prefetch = 0 : i64, scratch_operands = 0 : i64, tpu.core_type = #tpu.core_type<tc>} {
    %c0 = arith.constant 0 : index
    %c0_0 = arith.constant 0 : index
    %0 = vector.load %arg0[%c0, %c0_0] : memref<2x8xf32, #tpu.memory_space<vmem>>, vector<2x8xf32>
    %c0_1 = arith.constant 0 : index
    %c0_2 = arith.constant 0 : index
    %c0_3 = arith.constant 0 : index
    %1 = vector.load %arg2[%c0_1, %c0_2, %c0_3] : memref<3x8x16xf32, #tpu.memory_space<vmem>>, vector<1x8x16xf32>
    %2 = vector.shape_cast %1 : vector<1x8x16xf32> to vector<8x16xf32>
    %c1 = arith.constant 1 : index
    %c0_4 = arith.constant 0 : index
    %c0_5 = arith.constant 0 : index
    %3 = vector.load %arg2[%c1, %c0_4, %c0_5] : memref<3x8x16xf32, #tpu.memory_space<vmem>>, vector<1x8x16xf32>
    %4 = vector.shape_cast %3 : vector<1x8x16xf32> to vector<8x16xf32>
    %c2 = arith.constant 2 : index
    %c0_6 = arith.constant 0 : index
    %c0_7 = arith.constant 0 : index
    %5 = vector.load %arg2[%c2, %c0_6, %c0_7] : memref<3x8x16xf32, #tpu.memory_space<vmem>>, vector<1x8x16xf32>
    %6 = vector.shape_cast %5 : vector<1x8x16xf32> to vector<8x16xf32>
    %c0_8 = arith.constant 0 : index
    %c0_9 = arith.constant 0 : index
    %c0_10 = arith.constant 0 : index
    %7 = vector.load %arg3[%c0_8, %c0_9, %c0_10] : memref<3x16x16xf32, #tpu.memory_space<vmem>>, vector<1x16x16xf32>
    %8 = vector.shape_cast %7 : vector<1x16x16xf32> to vector<16x16xf32>
    %c1_11 = arith.constant 1 : index
    %c0_12 = arith.constant 0 : index
    %c0_13 = arith.constant 0 : index
    %9 = vector.load %arg3[%c1_11, %c0_12, %c0_13] : memref<3x16x16xf32, #tpu.memory_space<vmem>>, vector<1x16x16xf32>
    %10 = vector.shape_cast %9 : vector<1x16x16xf32> to vector<16x16xf32>
    %c2_14 = arith.constant 2 : index
    %c0_15 = arith.constant 0 : index
    %c0_16 = arith.constant 0 : index
    %11 = vector.load %arg3[%c2_14, %c0_15, %c0_16] : memref<3x16x16xf32, #tpu.memory_space<vmem>>, vector<1x16x16xf32>
    %12 = vector.shape_cast %11 : vector<1x16x16xf32> to vector<16x16xf32>
    %c0_17 = arith.constant 0 : index
    %c0_18 = arith.constant 0 : index
    %c0_19 = arith.constant 0 : index
    %13 = vector.load %arg4[%c0_17, %c0_18, %c0_19] : memref<4x1x16xf32, #tpu.memory_space<vmem>>, vector<1x1x16xf32>
    %14 = vector.shape_cast %13 : vector<1x1x16xf32> to vector<1x16xf32>
    %c1_20 = arith.constant 1 : index
    %c0_21 = arith.constant 0 : index
    %c0_22 = arith.constant 0 : index
    %15 = vector.load %arg4[%c1_20, %c0_21, %c0_22] : memref<4x1x16xf32, #tpu.memory_space<vmem>>, vector<1x1x16xf32>
    %16 = vector.shape_cast %15 : vector<1x1x16xf32> to vector<1x16xf32>
    %c2_23 = arith.constant 2 : index
    %c0_24 = arith.constant 0 : index
    %c0_25 = arith.constant 0 : index
    %17 = vector.load %arg4[%c2_23, %c0_24, %c0_25] : memref<4x1x16xf32, #tpu.memory_space<vmem>>, vector<1x1x16xf32>
    %18 = vector.shape_cast %17 : vector<1x1x16xf32> to vector<1x16xf32>
    %c3 = arith.constant 3 : index
    %c0_26 = arith.constant 0 : index
    %c0_27 = arith.constant 0 : index
    %19 = vector.load %arg4[%c3, %c0_26, %c0_27] : memref<4x1x16xf32, #tpu.memory_space<vmem>>, vector<1x1x16xf32>
    %20 = vector.shape_cast %19 : vector<1x1x16xf32> to vector<1x16xf32>
    %cst = arith.constant dense<0.000000e+00> : vector<2x16xf32>
    %21 = tpu.matmul %0, %2, %cst {dimension_numbers = #tpu.dot_dimension_numbers<[1], [0], [0], [1], [0, 0, 1, 1], [], []>} : vector<2x8xf32>, vector<8x16xf32>, vector<2x16xf32> -> vector<2x16xf32>
    %22 = vector.broadcast %14 : vector<1x16xf32> to vector<2x16xf32>
    %23 = arith.addf %21, %22 : vector<2x16xf32>
    %cst_28 = arith.constant dense<0.000000e+00> : vector<2x16xf32>
    %24 = tpu.matmul %0, %4, %cst_28 {dimension_numbers = #tpu.dot_dimension_numbers<[1], [0], [0], [1], [0, 0, 1, 1], [], []>} : vector<2x8xf32>, vector<8x16xf32>, vector<2x16xf32> -> vector<2x16xf32>
    %25 = vector.broadcast %16 : vector<1x16xf32> to vector<2x16xf32>
    %26 = arith.addf %24, %25 : vector<2x16xf32>
    %cst_29 = arith.constant dense<0.000000e+00> : vector<2x16xf32>
    %27 = tpu.matmul %0, %6, %cst_29 {dimension_numbers = #tpu.dot_dimension_numbers<[1], [0], [0], [1], [0, 0, 1, 1], [], []>} : vector<2x8xf32>, vector<8x16xf32>, vector<2x16xf32> -> vector<2x16xf32>
    %28 = vector.broadcast %18 : vector<1x16xf32> to vector<2x16xf32>
    %29 = arith.addf %27, %28 : vector<2x16xf32>
    %cst_30 = arith.constant 0.000000e+00 : f32
    %30 = vector.broadcast %cst_30 : f32 to vector<1x16xf32>
    %cst_31 = arith.constant dense<0.000000e+00> : vector<1x16xf32>
    %31 = tpu.matmul %30, %8, %cst_31 {dimension_numbers = #tpu.dot_dimension_numbers<[1], [0], [0], [1], [0, 0, 1, 1], [], []>} : vector<1x16xf32>, vector<16x16xf32>, vector<1x16xf32> -> vector<1x16xf32>
    %cst_32 = arith.constant dense<0.000000e+00> : vector<1x16xf32>
    %32 = tpu.matmul %30, %10, %cst_32 {dimension_numbers = #tpu.dot_dimension_numbers<[1], [0], [0], [1], [0, 0, 1, 1], [], []>} : vector<1x16xf32>, vector<16x16xf32>, vector<1x16xf32> -> vector<1x16xf32>
    %cst_33 = arith.constant dense<0.000000e+00> : vector<1x16xf32>
    %33 = tpu.matmul %30, %12, %cst_33 {dimension_numbers = #tpu.dot_dimension_numbers<[1], [0], [0], [1], [0, 0, 1, 1], [], []>} : vector<1x16xf32>, vector<16x16xf32>, vector<1x16xf32> -> vector<1x16xf32>
    %34 = arith.addf %33, %20 : vector<1x16xf32>
    %35 = vector.extract_strided_slice %23 {offsets = [0, 0], sizes = [1, 16], strides = [1, 1]} : vector<2x16xf32> to vector<1x16xf32>
    %36 = arith.addf %35, %31 : vector<1x16xf32>
    %37 = arith.negf %36 : vector<1x16xf32>
    %38 = math.exp %37 : vector<1x16xf32>
    %cst_34 = arith.constant 1.000000e+00 : f32
    %39 = vector.broadcast %cst_34 : f32 to vector<1x16xf32>
    %40 = arith.addf %39, %38 : vector<1x16xf32>
    %41 = arith.divf %39, %40 : vector<1x16xf32>
    %42 = vector.extract_strided_slice %26 {offsets = [0, 0], sizes = [1, 16], strides = [1, 1]} : vector<2x16xf32> to vector<1x16xf32>
    %43 = arith.addf %42, %32 : vector<1x16xf32>
    %44 = arith.negf %43 : vector<1x16xf32>
    %45 = math.exp %44 : vector<1x16xf32>
    %cst_35 = arith.constant 1.000000e+00 : f32
    %46 = vector.broadcast %cst_35 : f32 to vector<1x16xf32>
    %47 = arith.addf %46, %45 : vector<1x16xf32>
    %48 = arith.divf %46, %47 : vector<1x16xf32>
    %49 = vector.extract_strided_slice %29 {offsets = [0, 0], sizes = [1, 16], strides = [1, 1]} : vector<2x16xf32> to vector<1x16xf32>
    %50 = arith.mulf %41, %34 : vector<1x16xf32>
    %51 = arith.addf %49, %50 : vector<1x16xf32>
    %52 = math.tanh %51 : vector<1x16xf32>
    %cst_36 = arith.constant 1.000000e+00 : f32
    %53 = vector.broadcast %cst_36 : f32 to vector<1x16xf32>
    %54 = arith.subf %53, %48 : vector<1x16xf32>
    %55 = arith.mulf %54, %52 : vector<1x16xf32>
    %56 = arith.mulf %48, %30 : vector<1x16xf32>
    %57 = arith.addf %55, %56 : vector<1x16xf32>
    %cst_37 = arith.constant dense<0.000000e+00> : vector<1x16xf32>
    %58 = tpu.matmul %57, %8, %cst_37 {dimension_numbers = #tpu.dot_dimension_numbers<[1], [0], [0], [1], [0, 0, 1, 1], [], []>} : vector<1x16xf32>, vector<16x16xf32>, vector<1x16xf32> -> vector<1x16xf32>
    %cst_38 = arith.constant dense<0.000000e+00> : vector<1x16xf32>
    %59 = tpu.matmul %57, %10, %cst_38 {dimension_numbers = #tpu.dot_dimension_numbers<[1], [0], [0], [1], [0, 0, 1, 1], [], []>} : vector<1x16xf32>, vector<16x16xf32>, vector<1x16xf32> -> vector<1x16xf32>
    %cst_39 = arith.constant dense<0.000000e+00> : vector<1x16xf32>
    %60 = tpu.matmul %57, %12, %cst_39 {dimension_numbers = #tpu.dot_dimension_numbers<[1], [0], [0], [1], [0, 0, 1, 1], [], []>} : vector<1x16xf32>, vector<16x16xf32>, vector<1x16xf32> -> vector<1x16xf32>
    %61 = arith.addf %60, %20 : vector<1x16xf32>
    %62 = vector.extract_strided_slice %23 {offsets = [1, 0], sizes = [1, 16], strides = [1, 1]} : vector<2x16xf32> to vector<1x16xf32>
    %63 = arith.addf %62, %58 : vector<1x16xf32>
    %64 = arith.negf %63 : vector<1x16xf32>
    %65 = math.exp %64 : vector<1x16xf32>
    %cst_40 = arith.constant 1.000000e+00 : f32
    %66 = vector.broadcast %cst_40 : f32 to vector<1x16xf32>
    %67 = arith.addf %66, %65 : vector<1x16xf32>
    %68 = arith.divf %66, %67 : vector<1x16xf32>
    %69 = vector.extract_strided_slice %26 {offsets = [1, 0], sizes = [1, 16], strides = [1, 1]} : vector<2x16xf32> to vector<1x16xf32>
    %70 = arith.addf %69, %59 : vector<1x16xf32>
    %71 = arith.negf %70 : vector<1x16xf32>
    %72 = math.exp %71 : vector<1x16xf32>
    %cst_41 = arith.constant 1.000000e+00 : f32
    %73 = vector.broadcast %cst_41 : f32 to vector<1x16xf32>
    %74 = arith.addf %73, %72 : vector<1x16xf32>
    %75 = arith.divf %73, %74 : vector<1x16xf32>
    %76 = vector.extract_strided_slice %29 {offsets = [1, 0], sizes = [1, 16], strides = [1, 1]} : vector<2x16xf32> to vector<1x16xf32>
    %77 = arith.mulf %68, %61 : vector<1x16xf32>
    %78 = arith.addf %76, %77 : vector<1x16xf32>
    %79 = math.tanh %78 : vector<1x16xf32>
    %cst_42 = arith.constant 1.000000e+00 : f32
    %80 = vector.broadcast %cst_42 : f32 to vector<1x16xf32>
    %81 = arith.subf %80, %75 : vector<1x16xf32>
    %82 = arith.mulf %81, %79 : vector<1x16xf32>
    %83 = arith.mulf %75, %57 : vector<1x16xf32>
    %84 = arith.addf %82, %83 : vector<1x16xf32>
    %85 = tpu.concatenate %57, %84 in 0 : vector<1x16xf32>, vector<1x16xf32> -> vector<2x16xf32>
    %c0_43 = arith.constant 0 : index
    %c0_44 = arith.constant 0 : index
    %c0_45 = arith.constant 0 : index
    %86 = vector.load %arg5[%c0_43, %c0_44, %c0_45] : memref<3x16x16xf32, #tpu.memory_space<vmem>>, vector<1x16x16xf32>
    %87 = vector.shape_cast %86 : vector<1x16x16xf32> to vector<16x16xf32>
    %c1_46 = arith.constant 1 : index
    %c0_47 = arith.constant 0 : index
    %c0_48 = arith.constant 0 : index
    %88 = vector.load %arg5[%c1_46, %c0_47, %c0_48] : memref<3x16x16xf32, #tpu.memory_space<vmem>>, vector<1x16x16xf32>
    %89 = vector.shape_cast %88 : vector<1x16x16xf32> to vector<16x16xf32>
    %c2_49 = arith.constant 2 : index
    %c0_50 = arith.constant 0 : index
    %c0_51 = arith.constant 0 : index
    %90 = vector.load %arg5[%c2_49, %c0_50, %c0_51] : memref<3x16x16xf32, #tpu.memory_space<vmem>>, vector<1x16x16xf32>
    %91 = vector.shape_cast %90 : vector<1x16x16xf32> to vector<16x16xf32>
    %c0_52 = arith.constant 0 : index
    %c0_53 = arith.constant 0 : index
    %c0_54 = arith.constant 0 : index
    %92 = vector.load %arg6[%c0_52, %c0_53, %c0_54] : memref<3x16x16xf32, #tpu.memory_space<vmem>>, vector<1x16x16xf32>
    %93 = vector.shape_cast %92 : vector<1x16x16xf32> to vector<16x16xf32>
    %c1_55 = arith.constant 1 : index
    %c0_56 = arith.constant 0 : index
    %c0_57 = arith.constant 0 : index
    %94 = vector.load %arg6[%c1_55, %c0_56, %c0_57] : memref<3x16x16xf32, #tpu.memory_space<vmem>>, vector<1x16x16xf32>
    %95 = vector.shape_cast %94 : vector<1x16x16xf32> to vector<16x16xf32>
    %c2_58 = arith.constant 2 : index
    %c0_59 = arith.constant 0 : index
    %c0_60 = arith.constant 0 : index
    %96 = vector.load %arg6[%c2_58, %c0_59, %c0_60] : memref<3x16x16xf32, #tpu.memory_space<vmem>>, vector<1x16x16xf32>
    %97 = vector.shape_cast %96 : vector<1x16x16xf32> to vector<16x16xf32>
    %c0_61 = arith.constant 0 : index
    %c0_62 = arith.constant 0 : index
    %c0_63 = arith.constant 0 : index
    %98 = vector.load %arg7[%c0_61, %c0_62, %c0_63] : memref<4x1x16xf32, #tpu.memory_space<vmem>>, vector<1x1x16xf32>
    %99 = vector.shape_cast %98 : vector<1x1x16xf32> to vector<1x16xf32>
    %c1_64 = arith.constant 1 : index
    %c0_65 = arith.constant 0 : index
    %c0_66 = arith.constant 0 : index
    %100 = vector.load %arg7[%c1_64, %c0_65, %c0_66] : memref<4x1x16xf32, #tpu.memory_space<vmem>>, vector<1x1x16xf32>
    %101 = vector.shape_cast %100 : vector<1x1x16xf32> to vector<1x16xf32>
    %c2_67 = arith.constant 2 : index
    %c0_68 = arith.constant 0 : index
    %c0_69 = arith.constant 0 : index
    %102 = vector.load %arg7[%c2_67, %c0_68, %c0_69] : memref<4x1x16xf32, #tpu.memory_space<vmem>>, vector<1x1x16xf32>
    %103 = vector.shape_cast %102 : vector<1x1x16xf32> to vector<1x16xf32>
    %c3_70 = arith.constant 3 : index
    %c0_71 = arith.constant 0 : index
    %c0_72 = arith.constant 0 : index
    %104 = vector.load %arg7[%c3_70, %c0_71, %c0_72] : memref<4x1x16xf32, #tpu.memory_space<vmem>>, vector<1x1x16xf32>
    %105 = vector.shape_cast %104 : vector<1x1x16xf32> to vector<1x16xf32>
    %cst_73 = arith.constant dense<0.000000e+00> : vector<2x16xf32>
    %106 = tpu.matmul %85, %87, %cst_73 {dimension_numbers = #tpu.dot_dimension_numbers<[1], [0], [0], [1], [0, 0, 1, 1], [], []>} : vector<2x16xf32>, vector<16x16xf32>, vector<2x16xf32> -> vector<2x16xf32>
    %107 = vector.broadcast %99 : vector<1x16xf32> to vector<2x16xf32>
    %108 = arith.addf %106, %107 : vector<2x16xf32>
    %cst_74 = arith.constant dense<0.000000e+00> : vector<2x16xf32>
    %109 = tpu.matmul %85, %89, %cst_74 {dimension_numbers = #tpu.dot_dimension_numbers<[1], [0], [0], [1], [0, 0, 1, 1], [], []>} : vector<2x16xf32>, vector<16x16xf32>, vector<2x16xf32> -> vector<2x16xf32>
    %110 = vector.broadcast %101 : vector<1x16xf32> to vector<2x16xf32>
    %111 = arith.addf %109, %110 : vector<2x16xf32>
    %cst_75 = arith.constant dense<0.000000e+00> : vector<2x16xf32>
    %112 = tpu.matmul %85, %91, %cst_75 {dimension_numbers = #tpu.dot_dimension_numbers<[1], [0], [0], [1], [0, 0, 1, 1], [], []>} : vector<2x16xf32>, vector<16x16xf32>, vector<2x16xf32> -> vector<2x16xf32>
    %113 = vector.broadcast %103 : vector<1x16xf32> to vector<2x16xf32>
    %114 = arith.addf %112, %113 : vector<2x16xf32>
    %cst_76 = arith.constant 0.000000e+00 : f32
    %115 = vector.broadcast %cst_76 : f32 to vector<1x16xf32>
    %cst_77 = arith.constant dense<0.000000e+00> : vector<1x16xf32>
    %116 = tpu.matmul %115, %93, %cst_77 {dimension_numbers = #tpu.dot_dimension_numbers<[1], [0], [0], [1], [0, 0, 1, 1], [], []>} : vector<1x16xf32>, vector<16x16xf32>, vector<1x16xf32> -> vector<1x16xf32>
    %cst_78 = arith.constant dense<0.000000e+00> : vector<1x16xf32>
    %117 = tpu.matmul %115, %95, %cst_78 {dimension_numbers = #tpu.dot_dimension_numbers<[1], [0], [0], [1], [0, 0, 1, 1], [], []>} : vector<1x16xf32>, vector<16x16xf32>, vector<1x16xf32> -> vector<1x16xf32>
    %cst_79 = arith.constant dense<0.000000e+00> : vector<1x16xf32>
    %118 = tpu.matmul %115, %97, %cst_79 {dimension_numbers = #tpu.dot_dimension_numbers<[1], [0], [0], [1], [0, 0, 1, 1], [], []>} : vector<1x16xf32>, vector<16x16xf32>, vector<1x16xf32> -> vector<1x16xf32>
    %119 = arith.addf %118, %105 : vector<1x16xf32>
    %120 = vector.extract_strided_slice %108 {offsets = [0, 0], sizes = [1, 16], strides = [1, 1]} : vector<2x16xf32> to vector<1x16xf32>
    %121 = arith.addf %120, %116 : vector<1x16xf32>
    %122 = arith.negf %121 : vector<1x16xf32>
    %123 = math.exp %122 : vector<1x16xf32>
    %cst_80 = arith.constant 1.000000e+00 : f32
    %124 = vector.broadcast %cst_80 : f32 to vector<1x16xf32>
    %125 = arith.addf %124, %123 : vector<1x16xf32>
    %126 = arith.divf %124, %125 : vector<1x16xf32>
    %127 = vector.extract_strided_slice %111 {offsets = [0, 0], sizes = [1, 16], strides = [1, 1]} : vector<2x16xf32> to vector<1x16xf32>
    %128 = arith.addf %127, %117 : vector<1x16xf32>
    %129 = arith.negf %128 : vector<1x16xf32>
    %130 = math.exp %129 : vector<1x16xf32>
    %cst_81 = arith.constant 1.000000e+00 : f32
    %131 = vector.broadcast %cst_81 : f32 to vector<1x16xf32>
    %132 = arith.addf %131, %130 : vector<1x16xf32>
    %133 = arith.divf %131, %132 : vector<1x16xf32>
    %134 = vector.extract_strided_slice %114 {offsets = [0, 0], sizes = [1, 16], strides = [1, 1]} : vector<2x16xf32> to vector<1x16xf32>
    %135 = arith.mulf %126, %119 : vector<1x16xf32>
    %136 = arith.addf %134, %135 : vector<1x16xf32>
    %137 = math.tanh %136 : vector<1x16xf32>
    %cst_82 = arith.constant 1.000000e+00 : f32
    %138 = vector.broadcast %cst_82 : f32 to vector<1x16xf32>
    %139 = arith.subf %138, %133 : vector<1x16xf32>
    %140 = arith.mulf %139, %137 : vector<1x16xf32>
    %141 = arith.mulf %133, %115 : vector<1x16xf32>
    %142 = arith.addf %140, %141 : vector<1x16xf32>
    %cst_83 = arith.constant dense<0.000000e+00> : vector<1x16xf32>
    %143 = tpu.matmul %142, %93, %cst_83 {dimension_numbers = #tpu.dot_dimension_numbers<[1], [0], [0], [1], [0, 0, 1, 1], [], []>} : vector<1x16xf32>, vector<16x16xf32>, vector<1x16xf32> -> vector<1x16xf32>
    %cst_84 = arith.constant dense<0.000000e+00> : vector<1x16xf32>
    %144 = tpu.matmul %142, %95, %cst_84 {dimension_numbers = #tpu.dot_dimension_numbers<[1], [0], [0], [1], [0, 0, 1, 1], [], []>} : vector<1x16xf32>, vector<16x16xf32>, vector<1x16xf32> -> vector<1x16xf32>
    %cst_85 = arith.constant dense<0.000000e+00> : vector<1x16xf32>
    %145 = tpu.matmul %142, %97, %cst_85 {dimension_numbers = #tpu.dot_dimension_numbers<[1], [0], [0], [1], [0, 0, 1, 1], [], []>} : vector<1x16xf32>, vector<16x16xf32>, vector<1x16xf32> -> vector<1x16xf32>
    %146 = arith.addf %145, %105 : vector<1x16xf32>
    %147 = vector.extract_strided_slice %108 {offsets = [1, 0], sizes = [1, 16], strides = [1, 1]} : vector<2x16xf32> to vector<1x16xf32>
    %148 = arith.addf %147, %143 : vector<1x16xf32>
    %149 = arith.negf %148 : vector<1x16xf32>
    %150 = math.exp %149 : vector<1x16xf32>
    %cst_86 = arith.constant 1.000000e+00 : f32
    %151 = vector.broadcast %cst_86 : f32 to vector<1x16xf32>
    %152 = arith.addf %151, %150 : vector<1x16xf32>
    %153 = arith.divf %151, %152 : vector<1x16xf32>
    %154 = vector.extract_strided_slice %111 {offsets = [1, 0], sizes = [1, 16], strides = [1, 1]} : vector<2x16xf32> to vector<1x16xf32>
    %155 = arith.addf %154, %144 : vector<1x16xf32>
    %156 = arith.negf %155 : vector<1x16xf32>
    %157 = math.exp %156 : vector<1x16xf32>
    %cst_87 = arith.constant 1.000000e+00 : f32
    %158 = vector.broadcast %cst_87 : f32 to vector<1x16xf32>
    %159 = arith.addf %158, %157 : vector<1x16xf32>
    %160 = arith.divf %158, %159 : vector<1x16xf32>
    %161 = vector.extract_strided_slice %114 {offsets = [1, 0], sizes = [1, 16], strides = [1, 1]} : vector<2x16xf32> to vector<1x16xf32>
    %162 = arith.mulf %153, %146 : vector<1x16xf32>
    %163 = arith.addf %161, %162 : vector<1x16xf32>
    %164 = math.tanh %163 : vector<1x16xf32>
    %cst_88 = arith.constant 1.000000e+00 : f32
    %165 = vector.broadcast %cst_88 : f32 to vector<1x16xf32>
    %166 = arith.subf %165, %160 : vector<1x16xf32>
    %167 = arith.mulf %166, %164 : vector<1x16xf32>
    %168 = arith.mulf %160, %142 : vector<1x16xf32>
    %169 = arith.addf %167, %168 : vector<1x16xf32>
    %170 = tpu.concatenate %142, %169 in 0 : vector<1x16xf32>, vector<1x16xf32> -> vector<2x16xf32>
    %c0_89 = arith.constant 0 : index
    %c0_90 = arith.constant 0 : index
    %171 = vector.load %arg1[%c0_89, %c0_90] : memref<2x8xf32, #tpu.memory_space<vmem>>, vector<2x8xf32>
    %c0_91 = arith.constant 0 : index
    %c0_92 = arith.constant 0 : index
    %172 = vector.load %arg8[%c0_91, %c0_92] : memref<8x32xf32, #tpu.memory_space<vmem>>, vector<8x32xf32>
    %cst_93 = arith.constant dense<0.000000e+00> : vector<2x32xf32>
    %173 = tpu.matmul %171, %172, %cst_93 {dimension_numbers = #tpu.dot_dimension_numbers<[1], [0], [0], [1], [0, 0, 1, 1], [], []>} : vector<2x8xf32>, vector<8x32xf32>, vector<2x32xf32> -> vector<2x32xf32>
    %c0_94 = arith.constant 0 : index
    %c0_95 = arith.constant 0 : index
    %174 = vector.load %arg9[%c0_94, %c0_95] : memref<1x32xf32, #tpu.memory_space<vmem>>, vector<1x32xf32>
    %175 = vector.broadcast %174 : vector<1x32xf32> to vector<2x32xf32>
    %176 = arith.addf %173, %175 : vector<2x32xf32>
    %cst_96 = arith.constant 0.000000e+00 : f32
    %177 = vector.broadcast %cst_96 : f32 to vector<2x32xf32>
    %178 = arith.maximumf %176, %177 : vector<2x32xf32>
    %c0_97 = arith.constant 0 : index
    %c0_98 = arith.constant 0 : index
    %179 = vector.load %arg10[%c0_97, %c0_98] : memref<32x32xf32, #tpu.memory_space<vmem>>, vector<32x32xf32>
    %cst_99 = arith.constant dense<0.000000e+00> : vector<2x32xf32>
    %180 = tpu.matmul %178, %179, %cst_99 {dimension_numbers = #tpu.dot_dimension_numbers<[1], [0], [0], [1], [0, 0, 1, 1], [], []>} : vector<2x32xf32>, vector<32x32xf32>, vector<2x32xf32> -> vector<2x32xf32>
    %c0_100 = arith.constant 0 : index
    %c0_101 = arith.constant 0 : index
    %181 = vector.load %arg11[%c0_100, %c0_101] : memref<1x32xf32, #tpu.memory_space<vmem>>, vector<1x32xf32>
    %182 = vector.broadcast %181 : vector<1x32xf32> to vector<2x32xf32>
    %183 = arith.addf %180, %182 : vector<2x32xf32>
    %cst_102 = arith.constant 0.000000e+00 : f32
    %184 = vector.broadcast %cst_102 : f32 to vector<2x32xf32>
    %185 = arith.maximumf %183, %184 : vector<2x32xf32>
    %c0_103 = arith.constant 0 : index
    %c0_104 = arith.constant 0 : index
    %186 = vector.load %arg12[%c0_103, %c0_104] : memref<32x16xf32, #tpu.memory_space<vmem>>, vector<32x16xf32>
    %cst_105 = arith.constant dense<0.000000e+00> : vector<2x16xf32>
    %187 = tpu.matmul %185, %186, %cst_105 {dimension_numbers = #tpu.dot_dimension_numbers<[1], [0], [0], [1], [0, 0, 1, 1], [], []>} : vector<2x32xf32>, vector<32x16xf32>, vector<2x16xf32> -> vector<2x16xf32>
    %c0_106 = arith.constant 0 : index
    %c0_107 = arith.constant 0 : index
    %188 = vector.load %arg13[%c0_106, %c0_107] : memref<1x16xf32, #tpu.memory_space<vmem>>, vector<1x16xf32>
    %189 = vector.broadcast %188 : vector<1x16xf32> to vector<2x16xf32>
    %190 = arith.addf %187, %189 : vector<2x16xf32>
    %c0_108 = arith.constant 0 : index
    %c0_109 = arith.constant 0 : index
    %191 = vector.load %arg14[%c0_108, %c0_109] : memref<16x32xf32, #tpu.memory_space<vmem>>, vector<16x32xf32>
    %cst_110 = arith.constant dense<0.000000e+00> : vector<2x32xf32>
    %192 = tpu.matmul %170, %191, %cst_110 {dimension_numbers = #tpu.dot_dimension_numbers<[1], [0], [0], [1], [0, 0, 1, 1], [], []>} : vector<2x16xf32>, vector<16x32xf32>, vector<2x32xf32> -> vector<2x32xf32>
    %c0_111 = arith.constant 0 : index
    %c0_112 = arith.constant 0 : index
    %193 = vector.load %arg15[%c0_111, %c0_112] : memref<16x32xf32, #tpu.memory_space<vmem>>, vector<16x32xf32>
    %cst_113 = arith.constant dense<0.000000e+00> : vector<2x32xf32>
    %194 = tpu.matmul %190, %193, %cst_113 {dimension_numbers = #tpu.dot_dimension_numbers<[1], [0], [0], [1], [0, 0, 1, 1], [], []>} : vector<2x16xf32>, vector<16x32xf32>, vector<2x32xf32> -> vector<2x32xf32>
    %195 = arith.addf %192, %194 : vector<2x32xf32>
    %c0_114 = arith.constant 0 : index
    %c0_115 = arith.constant 0 : index
    %196 = vector.load %arg16[%c0_114, %c0_115] : memref<1x32xf32, #tpu.memory_space<vmem>>, vector<1x32xf32>
    %197 = vector.broadcast %196 : vector<1x32xf32> to vector<2x32xf32>
    %198 = arith.addf %195, %197 : vector<2x32xf32>
    %cst_116 = arith.constant 0.000000e+00 : f32
    %199 = vector.broadcast %cst_116 : f32 to vector<2x32xf32>
    %200 = arith.maximumf %198, %199 : vector<2x32xf32>
    %c0_117 = arith.constant 0 : index
    %c0_118 = arith.constant 0 : index
    %201 = vector.load %arg17[%c0_117, %c0_118] : memref<32x32xf32, #tpu.memory_space<vmem>>, vector<32x32xf32>
    %cst_119 = arith.constant dense<0.000000e+00> : vector<2x32xf32>
    %202 = tpu.matmul %200, %201, %cst_119 {dimension_numbers = #tpu.dot_dimension_numbers<[1], [0], [0], [1], [0, 0, 1, 1], [], []>} : vector<2x32xf32>, vector<32x32xf32>, vector<2x32xf32> -> vector<2x32xf32>
    %c0_120 = arith.constant 0 : index
    %c0_121 = arith.constant 0 : index
    %203 = vector.load %arg18[%c0_120, %c0_121] : memref<1x32xf32, #tpu.memory_space<vmem>>, vector<1x32xf32>
    %204 = vector.broadcast %203 : vector<1x32xf32> to vector<2x32xf32>
    %205 = arith.addf %202, %204 : vector<2x32xf32>
    %cst_122 = arith.constant 0.000000e+00 : f32
    %206 = vector.broadcast %cst_122 : f32 to vector<2x32xf32>
    %207 = arith.maximumf %205, %206 : vector<2x32xf32>
    %c0_123 = arith.constant 0 : index
    %c0_124 = arith.constant 0 : index
    %208 = vector.load %arg19[%c0_123, %c0_124] : memref<32x32xf32, #tpu.memory_space<vmem>>, vector<32x32xf32>
    %cst_125 = arith.constant dense<0.000000e+00> : vector<2x32xf32>
    %209 = tpu.matmul %207, %208, %cst_125 {dimension_numbers = #tpu.dot_dimension_numbers<[1], [0], [0], [1], [0, 0, 1, 1], [], []>} : vector<2x32xf32>, vector<32x32xf32>, vector<2x32xf32> -> vector<2x32xf32>
    %c0_126 = arith.constant 0 : index
    %c0_127 = arith.constant 0 : index
    %210 = vector.load %arg20[%c0_126, %c0_127] : memref<1x32xf32, #tpu.memory_space<vmem>>, vector<1x32xf32>
    %211 = vector.broadcast %210 : vector<1x32xf32> to vector<2x32xf32>
    %212 = arith.addf %209, %211 : vector<2x32xf32>
    %cst_128 = arith.constant 0.000000e+00 : f32
    %213 = vector.broadcast %cst_128 : f32 to vector<2x32xf32>
    %214 = arith.maximumf %212, %213 : vector<2x32xf32>
    %c0_129 = arith.constant 0 : index
    %c0_130 = arith.constant 0 : index
    %215 = vector.load %arg21[%c0_129, %c0_130] : memref<32x4xf32, #tpu.memory_space<vmem>>, vector<32x4xf32>
    %cst_131 = arith.constant dense<0.000000e+00> : vector<2x4xf32>
    %216 = tpu.matmul %214, %215, %cst_131 {dimension_numbers = #tpu.dot_dimension_numbers<[1], [0], [0], [1], [0, 0, 1, 1], [], []>} : vector<2x32xf32>, vector<32x4xf32>, vector<2x4xf32> -> vector<2x4xf32>
    %c0_132 = arith.constant 0 : index
    %c0_133 = arith.constant 0 : index
    %217 = vector.load %arg22[%c0_132, %c0_133] : memref<1x4xf32, #tpu.memory_space<vmem>>, vector<1x4xf32>
    %218 = vector.broadcast %217 : vector<1x4xf32> to vector<2x4xf32>
    %219 = arith.addf %216, %218 : vector<2x4xf32>
    %c0_134 = arith.constant 0 : index
    %c0_135 = arith.constant 0 : index
    %220 = vector.load %arg23[%c0_134, %c0_135] : memref<2x4xf32, #tpu.memory_space<vmem>>, vector<2x4xf32>
    tpu.vector_store %arg23[%c0_134, %c0_135], %219 {strides = array<i32>} : memref<2x4xf32, #tpu.memory_space<vmem>>, vector<2x4xf32>,
    return
  }
}

</mosaic_0001>

<llo_original>
// kernel: forward_pallas.1
$region0: #{forward_pallas.1}
  #allocation0 [shape = 'u32[]', space=smem, size = 0x4, offset = 0x4, fixed_abs, tag = 'smem constant byte address 0x4 - core index']
  #allocation1 [shape = 'u32[144,128]{1,0:T(1,128)}', space=vmem, size = 0x12000, scoped, tag = 'internal scratch']
  %s0 = inlined_call_operand.vmem [shape: f32[2,8], index: 0, kind: input, shape index: {}]
  %s1 = inlined_call_operand.vmem [shape: f32[2,8], index: 1, kind: input, shape index: {}]
  %s2 = inlined_call_operand.vmem [shape: f32[3,8,16], index: 2, kind: input, shape index: {}]
  %s3 = inlined_call_operand.vmem [shape: f32[3,16,16], index: 3, kind: input, shape index: {}]
  %s4 = inlined_call_operand.vmem [shape: f32[4,1,16], index: 4, kind: input, shape index: {}]
  %s5 = inlined_call_operand.vmem [shape: f32[3,16,16], index: 5, kind: input, shape index: {}]
  %s6 = inlined_call_operand.vmem [shape: f32[3,16,16], index: 6, kind: input, shape index: {}]
  %s7 = inlined_call_operand.vmem [shape: f32[4,1,16], index: 7, kind: input, shape index: {}]
  %s8 = inlined_call_operand.vmem [shape: f32[8,32], index: 8, kind: input, shape index: {}]
  %s9 = inlined_call_operand.vmem [shape: f32[1,32], index: 9, kind: input, shape index: {}]
  %s10 = inlined_call_operand.vmem [shape: f32[32,32], index: 10, kind: input, shape index: {}]
  %s11 = inlined_call_operand.vmem [shape: f32[1,32], index: 11, kind: input, shape index: {}]
  %s12 = inlined_call_operand.vmem [shape: f32[32,16], index: 12, kind: input, shape index: {}]
  %s13 = inlined_call_operand.vmem [shape: f32[1,16], index: 13, kind: input, shape index: {}]
  %s14 = inlined_call_operand.vmem [shape: f32[16,32], index: 14, kind: input, shape index: {}]
  %s15 = inlined_call_operand.vmem [shape: f32[16,32], index: 15, kind: input, shape index: {}]
  %s16 = inlined_call_operand.vmem [shape: f32[1,32], index: 16, kind: input, shape index: {}]
  %s17 = inlined_call_operand.vmem [shape: f32[32,32], index: 17, kind: input, shape index: {}]
  %s18 = inlined_call_operand.vmem [shape: f32[1,32], index: 18, kind: input, shape index: {}]
  %s19 = inlined_call_operand.vmem [shape: f32[32,32], index: 19, kind: input, shape index: {}]
  %s20 = inlined_call_operand.vmem [shape: f32[1,32], index: 20, kind: input, shape index: {}]
  %s21 = inlined_call_operand.vmem [shape: f32[32,4], index: 21, kind: input, shape index: {}]
  %s22 = inlined_call_operand.vmem [shape: f32[1,4], index: 22, kind: input, shape index: {}]
  %s23 = inlined_call_operand.hbm [shape: f32[2,4], index: 23, kind: output, shape index: {}]
  %s24 = sld [smem:[#allocation0]]
  $region102: #{forward_pallas.1} parent=0
    _
  %s26 = ssub.s32 1, %s24
  %s27 = scalar_select 0, %s26, %s24
  $region1: #{forward_pallas.1} parent=0
    #allocation2 [shape = 'u8[1024]{0}', space=vmem, size = 0x400, scoped, tag = 'output window, operand 0, single buffered']
    #allocation3 [shape = 's32[1]{0}', space=sflag, size = 0x4, scoped, tag = 'scoped memory for forward_pallas.1']
    %28 = vsyncpa [#allocation3], 0
    // Predicated region
    $region2: #{forward_pallas.1} parent=1 // pred_check
      _
    $region3: #{forward_pallas.1} parent=1 // pred_check_branch
      %30 = sbr.rel (0) target = $region5
    $region4: #{forward_pallas.1} parent=1 // pred_region
      _
    $region5: #{forward_pallas.1} parent=1 // pred_fallthru
      _
    // Predicated region
    $region6: #{forward_pallas.1} parent=1 // pred_check
      _
    $region7: #{forward_pallas.1} parent=1 // pred_check_branch
      %32 = sbr.rel (0) target = $region9
    $region8: #{forward_pallas.1} parent=1 // pred_region
      _
    $region9: #{forward_pallas.1} parent=1 // pred_fallthru
      _
    // Predicated region
    $region10: #{forward_pallas.1} parent=1 // pred_check
      _
    $region11: #{forward_pallas.1} parent=1 // pred_check_branch
      %34 = sbr.rel (0) target = $region13
    $region12: #{forward_pallas.1} parent=1 // pred_region
      _
    $region13: #{forward_pallas.1} parent=1 // pred_fallthru
      _
    // Predicated region
    $region14: #{forward_pallas.1} parent=1 // pred_check
      _
    $region15: #{forward_pallas.1} parent=1 // pred_check_branch
      %36 = sbr.rel (0) target = $region17
    $region16: #{forward_pallas.1} parent=1 // pred_region
      _
    $region17: #{forward_pallas.1} parent=1 // pred_fallthru
      _
    // Predicated region
    $region18: #{forward_pallas.1} parent=1 // pred_check
      _
    $region19: #{forward_pallas.1} parent=1 // pred_check_branch
      %38 = sbr.rel (0) target = $region21
    $region20: #{forward_pallas.1} parent=1 // pred_region
      _
    $region21: #{forward_pallas.1} parent=1 // pred_fallthru
      _
    // Predicated region
    $region22: #{forward_pallas.1} parent=1 // pred_check
      _
    $region23: #{forward_pallas.1} parent=1 // pred_check_branch
      %40 = sbr.rel (0) target = $region25
    $region24: #{forward_pallas.1} parent=1 // pred_region
      _
    $region25: #{forward_pallas.1} parent=1 // pred_fallthru
      _
    // Predicated region
    $region26: #{forward_pallas.1} parent=1 // pred_check
      _
    $region27: #{forward_pallas.1} parent=1 // pred_check_branch
      %42 = sbr.rel (0) target = $region29
    $region28: #{forward_pallas.1} parent=1 // pred_region
      _
    $region29: #{forward_pallas.1} parent=1 // pred_fallthru
      _
    // Predicated region
    $region30: #{forward_pallas.1} parent=1 // pred_check
      _
    $region31: #{forward_pallas.1} parent=1 // pred_check_branch
      %44 = sbr.rel (0) target = $region33
    $region32: #{forward_pallas.1} parent=1 // pred_region
      _
    $region33: #{forward_pallas.1} parent=1 // pred_fallthru
      _
    // Predicated region
    $region34: #{forward_pallas.1} parent=1 // pred_check
      _
    $region35: #{forward_pallas.1} parent=1 // pred_check_branch
      %46 = sbr.rel (0) target = $region37
    $region36: #{forward_pallas.1} parent=1 // pred_region
      _
    $region37: #{forward_pallas.1} parent=1 // pred_fallthru
      _
    // Predicated region
    $region38: #{forward_pallas.1} parent=1 // pred_check
      _
    $region39: #{forward_pallas.1} parent=1 // pred_check_branch
      %48 = sbr.rel (0) target = $region41
    $region40: #{forward_pallas.1} parent=1 // pred_region
      _
    $region41: #{forward_pallas.1} parent=1 // pred_fallthru
      _
    // Predicated region
    $region42: #{forward_pallas.1} parent=1 // pred_check
      _
    $region43: #{forward_pallas.1} parent=1 // pred_check_branch
      %50 = sbr.rel (0) target = $region45
    $region44: #{forward_pallas.1} parent=1 // pred_region
      _
    $region45: #{forward_pallas.1} parent=1 // pred_fallthru
      _
    // Predicated region
    $region46: #{forward_pallas.1} parent=1 // pred_check
      _
    $region47: #{forward_pallas.1} parent=1 // pred_check_branch
      %52 = sbr.rel (0) target = $region49
    $region48: #{forward_pallas.1} parent=1 // pred_region
      _
    $region49: #{forward_pallas.1} parent=1 // pred_fallthru
      _
    // Predicated region
    $region50: #{forward_pallas.1} parent=1 // pred_check
      _
    $region51: #{forward_pallas.1} parent=1 // pred_check_branch
      %54 = sbr.rel (0) target = $region53
    $region52: #{forward_pallas.1} parent=1 // pred_region
      _
    $region53: #{forward_pallas.1} parent=1 // pred_fallthru
      _
    // Predicated region
    $region54: #{forward_pallas.1} parent=1 // pred_check
      _
    $region55: #{forward_pallas.1} parent=1 // pred_check_branch
      %56 = sbr.rel (0) target = $region57
    $region56: #{forward_pallas.1} parent=1 // pred_region
      _
    $region57: #{forward_pallas.1} parent=1 // pred_fallthru
      _
    // Predicated region
    $region58: #{forward_pallas.1} parent=1 // pred_check
      _
    $region59: #{forward_pallas.1} parent=1 // pred_check_branch
      %58 = sbr.rel (0) target = $region61
    $region60: #{forward_pallas.1} parent=1 // pred_region
      _
    $region61: #{forward_pallas.1} parent=1 // pred_fallthru
      _
    // Predicated region
    $region62: #{forward_pallas.1} parent=1 // pred_check
      _
    $region63: #{forward_pallas.1} parent=1 // pred_check_branch
      %60 = sbr.rel (0) target = $region65
    $region64: #{forward_pallas.1} parent=1 // pred_region
      _
    $region65: #{forward_pallas.1} parent=1 // pred_fallthru
      _
    // Predicated region
    $region66: #{forward_pallas.1} parent=1 // pred_check
      _
    $region67: #{forward_pallas.1} parent=1 // pred_check_branch
      %62 = sbr.rel (0) target = $region69
    $region68: #{forward_pallas.1} parent=1 // pred_region
      _
    $region69: #{forward_pallas.1} parent=1 // pred_fallthru
      _
    // Predicated region
    $region70: #{forward_pallas.1} parent=1 // pred_check
      _
    $region71: #{forward_pallas.1} parent=1 // pred_check_branch
      %64 = sbr.rel (0) target = $region73
    $region72: #{forward_pallas.1} parent=1 // pred_region
      _
    $region73: #{forward_pallas.1} parent=1 // pred_fallthru
      _
    // Predicated region
    $region74: #{forward_pallas.1} parent=1 // pred_check
      _
    $region75: #{forward_pallas.1} parent=1 // pred_check_branch
      %66 = sbr.rel (0) target = $region77
    $region76: #{forward_pallas.1} parent=1 // pred_region
      _
    $region77: #{forward_pallas.1} parent=1 // pred_fallthru
      _
    // Predicated region
    $region78: #{forward_pallas.1} parent=1 // pred_check
      _
    $region79: #{forward_pallas.1} parent=1 // pred_check_branch
      %68 = sbr.rel (0) target = $region81
    $region80: #{forward_pallas.1} parent=1 // pred_region
      _
    $region81: #{forward_pallas.1} parent=1 // pred_fallthru
      _
    // Predicated region
    $region82: #{forward_pallas.1} parent=1 // pred_check
      _
    $region83: #{forward_pallas.1} parent=1 // pred_check_branch
      %70 = sbr.rel (0) target = $region85
    $region84: #{forward_pallas.1} parent=1 // pred_region
      _
    $region85: #{forward_pallas.1} parent=1 // pred_fallthru
      _
    // Predicated region
    $region86: #{forward_pallas.1} parent=1 // pred_check
      _
    $region87: #{forward_pallas.1} parent=1 // pred_check_branch
      %72 = sbr.rel (0) target = $region89
    $region88: #{forward_pallas.1} parent=1 // pred_region
      _
    $region89: #{forward_pallas.1} parent=1 // pred_fallthru
      _
    // Predicated region
    $region90: #{forward_pallas.1} parent=1 // pred_check
      _
    $region91: #{forward_pallas.1} parent=1 // pred_check_branch
      %74 = sbr.rel (0) target = $region93
    $region92: #{forward_pallas.1} parent=1 // pred_region
      _
    $region93: #{forward_pallas.1} parent=1 // pred_fallthru
      _
    %v75 = vld [vmem:[%s0] sm:$0x3]
    %v76 = vld [vmem:[%s2] sm:$0xff]
    %s77 = scalar_lea.vmem %s2, 8
    %v78 = vld [vmem:[%s77] sm:$0xff]
    %s79 = scalar_lea.vmem %s2, 16
    %v80 = vld [vmem:[%s79] sm:$0xff]
    %v81 = vld [vmem:[%s3] sm:$0xff]
    %v82 = vld [vmem:[%s3 + $0x8] sm:$0xff]
    %s83 = scalar_lea.vmem %s3, 16
    %v84 = vld [vmem:[%s83] sm:$0xff]
    %v85 = vld [vmem:[%s83 + $0x8] sm:$0xff]
    %s86 = scalar_lea.vmem %s3, 32
    %v87 = vld [vmem:[%s86] sm:$0xff]
    %v88 = vld [vmem:[%s86 + $0x8] sm:$0xff]
    %v89 = vld [vmem:[%s4] sm:$0x1]
    %s90 = scalar_lea.vmem %s4, 1
    %v91 = vld [vmem:[%s90] sm:$0x1]
    %s92 = scalar_lea.vmem %s4, 2
    %v93 = vld [vmem:[%s92] sm:$0x1]
    %s94 = scalar_lea.vmem %s4, 3
    %v95 = vld [vmem:[%s94] sm:$0x1]
    %v97 = vlaneseq
    %v98 = vshrl.u32 %v97, 7
    %v99 = vsub.s32 0, %v98
    %v100 = vrot.slane %v89, %v99
    %vm102 = vcmask 64512
    %v104 = vsel %vm102, %v75, 0
    %106 = vmatprep.subr.mxu0 0.0
    %107 = vmatpush1.msra.mxu0 %v76
    %108 = vmatprep.subr.mxu0 0.0
    %109 = vmatpush1.msra.mxu0 0.0
    %110 = vmatprep.subr.mxu0 0.0
    %111 = vmatpush1.msra.mxu0 0.0
    %112 = vmatprep.subr.mxu0 0.0
    %113 = vmatpush1.msra.mxu0 0.0
    %114 = vmatprep.subr.mxu0 0.0
    %115 = vmatpush1.msra.mxu0 0.0
    %116 = vmatprep.subr.mxu0 0.0
    %117 = vmatpush1.msra.mxu0 0.0
    %118 = vmatprep.subr.mxu0 0.0
    %119 = vmatpush1.msra.mxu0 0.0
    %120 = vmatprep.subr.mxu0 0.0
    %121 = vmatpush1.msra.mxu0 0.0
    %122 = vmatprep.subr.mxu0 0.0
    %123 = vmatpush1.msra.mxu0 0.0
    %124 = vmatprep.subr.mxu0 0.0
    %125 = vmatpush1.msra.mxu0 0.0
    %126 = vmatprep.subr.mxu0 0.0
    %127 = vmatpush1.msra.mxu0 0.0
    %128 = vmatprep.subr.mxu0 0.0
    %129 = vmatpush1.msra.mxu0 0.0
    %130 = vmatprep.subr.mxu0 0.0
    %131 = vmatpush1.msra.mxu0 0.0
    %132 = vmatprep.subr.mxu0 0.0
    %133 = vmatpush1.msra.mxu0 0.0
    %134 = vmatprep.subr.mxu0 0.0
    %135 = vmatpush1.msra.mxu0 0.0
    %136 = vmatprep.subr.mxu0 0.0
    %137 = vmatpush1.msra.mxu0 0.0
    %138 = vmatprep.subr.mxu0 0.0
    %139 = vmatpush1.msra.mxu0 0.0
    %140 = vmatprep.subr.mxu0 0.0
    %141 = vmatpush1.msra.mxu0 0.0
    %142 = vmatprep.subr.mxu0 0.0
    %143 = vmatpush1.msra.mxu0 0.0
    %144 = vmatprep.subr.mxu0 0.0
    %145 = vmatpush1.msra.mxu0 0.0
    %146 = vmatprep.subr.mxu0 0.0
    %147 = vmatpush1.msra.mxu0 0.0
    %148 = vmatprep.subr.mxu0 0.0
    %149 = vmatpush1.msra.mxu0 0.0
    %150 = vmatprep.subr.mxu0 0.0
    %151 = vmatpush1.msra.mxu0 0.0
    %152 = vmatprep.subr.mxu0 0.0
    %153 = vmatpush1.msra.mxu0 0.0
    %154 = vmatprep.subr.mxu0 0.0
    %155 = vmatpush1.msra.mxu0 0.0
    %156 = vmatprep.subr.mxu0 0.0
    %157 = vmatpush1.msra.mxu0 0.0
    %158 = vmatprep.subr.mxu0 0.0
    %159 = vmatpush1.msra.mxu0 0.0
    %160 = vmatprep.subr.mxu0 0.0
    %161 = vmatpush1.msra.mxu0 0.0
    %162 = vmatprep.subr.mxu0 0.0
    %163 = vmatpush1.msra.mxu0 0.0
    %164 = vmatprep.subr.mxu0 0.0
    %165 = vmatpush1.msra.mxu0 0.0
    %166 = vmatprep.subr.mxu0 0.0
    %167 = vmatpush1.msra.mxu0 0.0
    %168 = vmatprep.subr.mxu0 0.0
    %169 = vmatpush1.msra.mxu0 0.0
    %170 = vmatprep.mubr.f32.mxu0 0.0
    %171 = vmatmul.mubr.f32.gmra.mrb[0].mxu0 %v104
    %v172 = vpop.f32.mrb[0].mxu0
    %v173 = vadd.f32 %v100, %v172
    %v174 = vpop.f32.mrb[0].mxu0
    %175 = vdwg.mxu0
    %v177 = vlaneseq
    %v178 = vshrl.u32 %v177, 7
    %v179 = vsub.s32 0, %v178
    %v180 = vrot.slane %v91, %v179
    %182 = vmatprep.subr.mxu0 0.0
    %183 = vmatpush1.msra.mxu0 %v78
    %184 = vmatprep.subr.mxu0 0.0
    %185 = vmatpush1.msra.mxu0 0.0
    %186 = vmatprep.subr.mxu0 0.0
    %187 = vmatpush1.msra.mxu0 0.0
    %188 = vmatprep.subr.mxu0 0.0
    %189 = vmatpush1.msra.mxu0 0.0
    %190 = vmatprep.subr.mxu0 0.0
    %191 = vmatpush1.msra.mxu0 0.0
    %192 = vmatprep.subr.mxu0 0.0
    %193 = vmatpush1.msra.mxu0 0.0
    %194 = vmatprep.subr.mxu0 0.0
    %195 = vmatpush1.msra.mxu0 0.0
    %196 = vmatprep.subr.mxu0 0.0
    %197 = vmatpush1.msra.mxu0 0.0
    %198 = vmatprep.subr.mxu0 0.0
    %199 = vmatpush1.msra.mxu0 0.0
    %200 = vmatprep.subr.mxu0 0.0
    %201 = vmatpush1.msra.mxu0 0.0
    %202 = vmatprep.subr.mxu0 0.0
    %203 = vmatpush1.msra.mxu0 0.0
    %204 = vmatprep.subr.mxu0 0.0
    %205 = vmatpush1.msra.mxu0 0.0
    %206 = vmatprep.subr.mxu0 0.0
    %207 = vmatpush1.msra.mxu0 0.0
    %208 = vmatprep.subr.mxu0 0.0
    %209 = vmatpush1.msra.mxu0 0.0
    %210 = vmatprep.subr.mxu0 0.0
    %211 = vmatpush1.msra.mxu0 0.0
    %212 = vmatprep.subr.mxu0 0.0
    %213 = vmatpush1.msra.mxu0 0.0
    %214 = vmatprep.subr.mxu0 0.0
    %215 = vmatpush1.msra.mxu0 0.0
    %216 = vmatprep.subr.mxu0 0.0
    %217 = vmatpush1.msra.mxu0 0.0
    %218 = vmatprep.subr.mxu0 0.0
    %219 = vmatpush1.msra.mxu0 0.0
    %220 = vmatprep.subr.mxu0 0.0
    %221 = vmatpush1.msra.mxu0 0.0
    %222 = vmatprep.subr.mxu0 0.0
    %223 = vmatpush1.msra.mxu0 0.0
    %224 = vmatprep.subr.mxu0 0.0
    %225 = vmatpush1.msra.mxu0 0.0
    %226 = vmatprep.subr.mxu0 0.0
    %227 = vmatpush1.msra.mxu0 0.0
    %228 = vmatprep.subr.mxu0 0.0
    %229 = vmatpush1.msra.mxu0 0.0
    %230 = vmatprep.subr.mxu0 0.0
    %231 = vmatpush1.msra.mxu0 0.0
    %232 = vmatprep.subr.mxu0 0.0
    %233 = vmatpush1.msra.mxu0 0.0
    %234 = vmatprep.subr.mxu0 0.0
    %235 = vmatpush1.msra.mxu0 0.0
    %236 = vmatprep.subr.mxu0 0.0
    %237 = vmatpush1.msra.mxu0 0.0
    %238 = vmatprep.subr.mxu0 0.0
    %239 = vmatpush1.msra.mxu0 0.0
    %240 = vmatprep.subr.mxu0 0.0
    %241 = vmatpush1.msra.mxu0 0.0
    %242 = vmatprep.subr.mxu0 0.0
    %243 = vmatpush1.msra.mxu0 0.0
    %244 = vmatprep.subr.mxu0 0.0
    %245 = vmatpush1.msra.mxu0 0.0
    %246 = vmatprep.mubr.f32.mxu0 0.0
    %247 = vmatmul.mubr.f32.gmra.mrb[0].mxu0 %v104
    %v248 = vpop.f32.mrb[0].mxu0
    %v249 = vadd.f32 %v180, %v248
    %v250 = vpop.f32.mrb[0].mxu0
    %251 = vdwg.mxu0
    %v253 = vlaneseq
    %v254 = vshrl.u32 %v253, 7
    %v255 = vsub.s32 0, %v254
    %v256 = vrot.slane %v93, %v255
    %258 = vmatprep.subr.mxu0 0.0
    %259 = vmatpush1.msra.mxu0 %v80
    %260 = vmatprep.subr.mxu0 0.0
    %261 = vmatpush1.msra.mxu0 0.0
    %262 = vmatprep.subr.mxu0 0.0
    %263 = vmatpush1.msra.mxu0 0.0
    %264 = vmatprep.subr.mxu0 0.0
    %265 = vmatpush1.msra.mxu0 0.0
    %266 = vmatprep.subr.mxu0 0.0
    %267 = vmatpush1.msra.mxu0 0.0
    %268 = vmatprep.subr.mxu0 0.0
    %269 = vmatpush1.msra.mxu0 0.0
    %270 = vmatprep.subr.mxu0 0.0
    %271 = vmatpush1.msra.mxu0 0.0
    %272 = vmatprep.subr.mxu0 0.0
    %273 = vmatpush1.msra.mxu0 0.0
    %274 = vmatprep.subr.mxu0 0.0
    %275 = vmatpush1.msra.mxu0 0.0
    %276 = vmatprep.subr.mxu0 0.0
    %277 = vmatpush1.msra.mxu0 0.0
    %278 = vmatprep.subr.mxu0 0.0
    %279 = vmatpush1.msra.mxu0 0.0
    %280 = vmatprep.subr.mxu0 0.0
    %281 = vmatpush1.msra.mxu0 0.0
    %282 = vmatprep.subr.mxu0 0.0
    %283 = vmatpush1.msra.mxu0 0.0
    %284 = vmatprep.subr.mxu0 0.0
    %285 = vmatpush1.msra.mxu0 0.0
    %286 = vmatprep.subr.mxu0 0.0
    %287 = vmatpush1.msra.mxu0 0.0
    %288 = vmatprep.subr.mxu0 0.0
    %289 = vmatpush1.msra.mxu0 0.0
    %290 = vmatprep.subr.mxu0 0.0
    %291 = vmatpush1.msra.mxu0 0.0
    %292 = vmatprep.subr.mxu0 0.0
    %293 = vmatpush1.msra.mxu0 0.0
    %294 = vmatprep.subr.mxu0 0.0
    %295 = vmatpush1.msra.mxu0 0.0
    %296 = vmatprep.subr.mxu0 0.0
    %297 = vmatpush1.msra.mxu0 0.0
    %298 = vmatprep.subr.mxu0 0.0
    %299 = vmatpush1.msra.mxu0 0.0
    %300 = vmatprep.subr.mxu0 0.0
    %301 = vmatpush1.msra.mxu0 0.0
    %302 = vmatprep.subr.mxu0 0.0
    %303 = vmatpush1.msra.mxu0 0.0
    %304 = vmatprep.subr.mxu0 0.0
    %305 = vmatpush1.msra.mxu0 0.0
    %306 = vmatprep.subr.mxu0 0.0
    %307 = vmatpush1.msra.mxu0 0.0
    %308 = vmatprep.subr.mxu0 0.0
    %309 = vmatpush1.msra.mxu0 0.0
    %310 = vmatprep.subr.mxu0 0.0
    %311 = vmatpush1.msra.mxu0 0.0
    %312 = vmatprep.subr.mxu0 0.0
    %313 = vmatpush1.msra.mxu0 0.0
    %314 = vmatprep.subr.mxu0 0.0
    %315 = vmatpush1.msra.mxu0 0.0
    %316 = vmatprep.subr.mxu0 0.0
    %317 = vmatpush1.msra.mxu0 0.0
    %318 = vmatprep.subr.mxu0 0.0
    %319 = vmatpush1.msra.mxu0 0.0
    %320 = vmatprep.subr.mxu0 0.0
    %321 = vmatpush1.msra.mxu0 0.0
    %322 = vmatprep.mubr.f32.mxu0 0.0
    %323 = vmatmul.mubr.f32.gmra.mrb[0].mxu0 %v104
    %v324 = vpop.f32.mrb[0].mxu0
    %v325 = vadd.f32 %v256, %v324
    %v326 = vpop.f32.mrb[0].mxu0
    %327 = vdwg.mxu0
    %vm328 = vcmask 130048
    %v330 = vsel %vm328, 0.0, 0
    %332 = vmatprep.subr.mxu0 0.0
    %333 = vmatpush1.msra.mxu0 %v81
    %334 = vmatprep.subr.mxu0 0.0
    %335 = vmatpush1.msra.mxu0 %v82
    %336 = vmatprep.subr.mxu0 0.0
    %337 = vmatpush1.msra.mxu0 0.0
    %338 = vmatprep.subr.mxu0 0.0
    %339 = vmatpush1.msra.mxu0 0.0
    %340 = vmatprep.subr.mxu0 0.0
    %341 = vmatpush1.msra.mxu0 0.0
    %342 = vmatprep.subr.mxu0 0.0
    %343 = vmatpush1.msra.mxu0 0.0
    %344 = vmatprep.subr.mxu0 0.0
    %345 = vmatpush1.msra.mxu0 0.0
    %346 = vmatprep.subr.mxu0 0.0
    %347 = vmatpush1.msra.mxu0 0.0
    %348 = vmatprep.subr.mxu0 0.0
    %349 = vmatpush1.msra.mxu0 0.0
    %350 = vmatprep.subr.mxu0 0.0
    %351 = vmatpush1.msra.mxu0 0.0
    %352 = vmatprep.subr.mxu0 0.0
    %353 = vmatpush1.msra.mxu0 0.0
    %354 = vmatprep.subr.mxu0 0.0
    %355 = vmatpush1.msra.mxu0 0.0
    %356 = vmatprep.subr.mxu0 0.0
    %357 = vmatpush1.msra.mxu0 0.0
    %358 = vmatprep.subr.mxu0 0.0
    %359 = vmatpush1.msra.mxu0 0.0
    %360 = vmatprep.subr.mxu0 0.0
    %361 = vmatpush1.msra.mxu0 0.0
    %362 = vmatprep.subr.mxu0 0.0
    %363 = vmatpush1.msra.mxu0 0.0
    %364 = vmatprep.subr.mxu0 0.0
    %365 = vmatpush1.msra.mxu0 0.0
    %366 = vmatprep.subr.mxu0 0.0
    %367 = vmatpush1.msra.mxu0 0.0
    %368 = vmatprep.subr.mxu0 0.0
    %369 = vmatpush1.msra.mxu0 0.0
    %370 = vmatprep.subr.mxu0 0.0
    %371 = vmatpush1.msra.mxu0 0.0
    %372 = vmatprep.subr.mxu0 0.0
    %373 = vmatpush1.msra.mxu0 0.0
    %374 = vmatprep.subr.mxu0 0.0
    %375 = vmatpush1.msra.mxu0 0.0
    %376 = vmatprep.subr.mxu0 0.0
    %377 = vmatpush1.msra.mxu0 0.0
    %378 = vmatprep.subr.mxu0 0.0
    %379 = vmatpush1.msra.mxu0 0.0
    %380 = vmatprep.subr.mxu0 0.0
    %381 = vmatpush1.msra.mxu0 0.0
    %382 = vmatprep.subr.mxu0 0.0
    %383 = vmatpush1.msra.mxu0 0.0
    %384 = vmatprep.subr.mxu0 0.0
    %385 = vmatpush1.msra.mxu0 0.0
    %386 = vmatprep.subr.mxu0 0.0
    %387 = vmatpush1.msra.mxu0 0.0
    %388 = vmatprep.subr.mxu0 0.0
    %389 = vmatpush1.msra.mxu0 0.0
    %390 = vmatprep.subr.mxu0 0.0
    %391 = vmatpush1.msra.mxu0 0.0
    %392 = vmatprep.subr.mxu0 0.0
    %393 = vmatpush1.msra.mxu0 0.0
    %394 = vmatprep.subr.mxu0 0.0
    %395 = vmatpush1.msra.mxu0 0.0
    %396 = vmatprep.mubr.f32.mxu0 0.0
    %397 = vmatmul.mubr.f32.gmra.mrb[0].mxu0 %v330
    %v398 = vpop.f32.mrb[0].mxu0
    %v399 = vadd.f32 0.0, %v398
    %v400 = vpop.f32.mrb[0].mxu0
    %401 = vdwg.mxu0
    %402 = vmatprep.subr.mxu0 0.0
    %403 = vmatpush1.msra.mxu0 %v84
    %404 = vmatprep.subr.mxu0 0.0
    %405 = vmatpush1.msra.mxu0 %v85
    %406 = vmatprep.subr.mxu0 0.0
    %407 = vmatpush1.msra.mxu0 0.0
    %408 = vmatprep.subr.mxu0 0.0
    %409 = vmatpush1.msra.mxu0 0.0
    %410 = vmatprep.subr.mxu0 0.0
    %411 = vmatpush1.msra.mxu0 0.0
    %412 = vmatprep.subr.mxu0 0.0
    %413 = vmatpush1.msra.mxu0 0.0
    %414 = vmatprep.subr.mxu0 0.0
    %415 = vmatpush1.msra.mxu0 0.0
    %416 = vmatprep.subr.mxu0 0.0
    %417 = vmatpush1.msra.mxu0 0.0
    %418 = vmatprep.subr.mxu0 0.0
    %419 = vmatpush1.msra.mxu0 0.0
    %420 = vmatprep.subr.mxu0 0.0
    %421 = vmatpush1.msra.mxu0 0.0
    %422 = vmatprep.subr.mxu0 0.0
    %423 = vmatpush1.msra.mxu0 0.0
    %424 = vmatprep.subr.mxu0 0.0
    %425 = vmatpush1.msra.mxu0 0.0
    %426 = vmatprep.subr.mxu0 0.0
    %427 = vmatpush1.msra.mxu0 0.0
    %428 = vmatprep.subr.mxu0 0.0
    %429 = vmatpush1.msra.mxu0 0.0
    %430 = vmatprep.subr.mxu0 0.0
    %431 = vmatpush1.msra.mxu0 0.0
    %432 = vmatprep.subr.mxu0 0.0
    %433 = vmatpush1.msra.mxu0 0.0
    %434 = vmatprep.subr.mxu0 0.0
    %435 = vmatpush1.msra.mxu0 0.0
    %436 = vmatprep.subr.mxu0 0.0
    %437 = vmatpush1.msra.mxu0 0.0
    %438 = vmatprep.subr.mxu0 0.0
    %439 = vmatpush1.msra.mxu0 0.0
    %440 = vmatprep.subr.mxu0 0.0
    %441 = vmatpush1.msra.mxu0 0.0
    %442 = vmatprep.subr.mxu0 0.0
    %443 = vmatpush1.msra.mxu0 0.0
    %444 = vmatprep.subr.mxu0 0.0
    %445 = vmatpush1.msra.mxu0 0.0
    %446 = vmatprep.subr.mxu0 0.0
    %447 = vmatpush1.msra.mxu0 0.0
    %448 = vmatprep.subr.mxu0 0.0
    %449 = vmatpush1.msra.mxu0 0.0
    %450 = vmatprep.subr.mxu0 0.0
    %451 = vmatpush1.msra.mxu0 0.0
    %452 = vmatprep.subr.mxu0 0.0
    %453 = vmatpush1.msra.mxu0 0.0
    %454 = vmatprep.subr.mxu0 0.0
    %455 = vmatpush1.msra.mxu0 0.0
    %456 = vmatprep.subr.mxu0 0.0
    %457 = vmatpush1.msra.mxu0 0.0
    %458 = vmatprep.subr.mxu0 0.0
    %459 = vmatpush1.msra.mxu0 0.0
    %460 = vmatprep.subr.mxu0 0.0
    %461 = vmatpush1.msra.mxu0 0.0
    %462 = vmatprep.subr.mxu0 0.0
    %463 = vmatpush1.msra.mxu0 0.0
    %464 = vmatprep.subr.mxu0 0.0
    %465 = vmatpush1.msra.mxu0 0.0
    %466 = vmatprep.mubr.f32.mxu0 0.0
    %467 = vmatmul.mubr.f32.gmra.mrb[0].mxu0 %v330
    %v468 = vpop.f32.mrb[0].mxu0
    %v469 = vadd.f32 0.0, %v468
    %v470 = vpop.f32.mrb[0].mxu0
    %471 = vdwg.mxu0
    %472 = vmatprep.subr.mxu0 0.0
    %473 = vmatpush1.msra.mxu0 %v87
    %474 = vmatprep.subr.mxu0 0.0
    %475 = vmatpush1.msra.mxu0 %v88
    %476 = vmatprep.subr.mxu0 0.0
    %477 = vmatpush1.msra.mxu0 0.0
    %478 = vmatprep.subr.mxu0 0.0
    %479 = vmatpush1.msra.mxu0 0.0
    %480 = vmatprep.subr.mxu0 0.0
    %481 = vmatpush1.msra.mxu0 0.0
    %482 = vmatprep.subr.mxu0 0.0
    %483 = vmatpush1.msra.mxu0 0.0
    %484 = vmatprep.subr.mxu0 0.0
    %485 = vmatpush1.msra.mxu0 0.0
    %486 = vmatprep.subr.mxu0 0.0
    %487 = vmatpush1.msra.mxu0 0.0
    %488 = vmatprep.subr.mxu0 0.0
    %489 = vmatpush1.msra.mxu0 0.0
    %490 = vmatprep.subr.mxu0 0.0
    %491 = vmatpush1.msra.mxu0 0.0
    %492 = vmatprep.subr.mxu0 0.0
    %493 = vmatpush1.msra.mxu0 0.0
    %494 = vmatprep.subr.mxu0 0.0
    %495 = vmatpush1.msra.mxu0 0.0
    %496 = vmatprep.subr.mxu0 0.0
    %497 = vmatpush1.msra.mxu0 0.0
    %498 = vmatprep.subr.mxu0 0.0
    %499 = vmatpush1.msra.mxu0 0.0
    %500 = vmatprep.subr.mxu0 0.0
    %501 = vmatpush1.msra.mxu0 0.0
    %502 = vmatprep.subr.mxu0 0.0
    %503 = vmatpush1.msra.mxu0 0.0
    %504 = vmatprep.subr.mxu0 0.0
    %505 = vmatpush1.msra.mxu0 0.0
    %506 = vmatprep.subr.mxu0 0.0
    %507 = vmatpush1.msra.mxu0 0.0
    %508 = vmatprep.subr.mxu0 0.0
    %509 = vmatpush1.msra.mxu0 0.0
    %510 = vmatprep.subr.mxu0 0.0
    %511 = vmatpush1.msra.mxu0 0.0
    %512 = vmatprep.subr.mxu0 0.0
    %513 = vmatpush1.msra.mxu0 0.0
    %514 = vmatprep.subr.mxu0 0.0
    %515 = vmatpush1.msra.mxu0 0.0
    %516 = vmatprep.subr.mxu0 0.0
    %517 = vmatpush1.msra.mxu0 0.0
    %518 = vmatprep.subr.mxu0 0.0
    %519 = vmatpush1.msra.mxu0 0.0
    %520 = vmatprep.subr.mxu0 0.0
    %521 = vmatpush1.msra.mxu0 0.0
    %522 = vmatprep.subr.mxu0 0.0
    %523 = vmatpush1.msra.mxu0 0.0
    %524 = vmatprep.subr.mxu0 0.0
    %525 = vmatpush1.msra.mxu0 0.0
    %526 = vmatprep.subr.mxu0 0.0
    %527 = vmatpush1.msra.mxu0 0.0
    %528 = vmatprep.subr.mxu0 0.0
    %529 = vmatpush1.msra.mxu0 0.0
    %530 = vmatprep.subr.mxu0 0.0
    %531 = vmatpush1.msra.mxu0 0.0
    %532 = vmatprep.subr.mxu0 0.0
    %533 = vmatpush1.msra.mxu0 0.0
    %534 = vmatprep.subr.mxu0 0.0
    %535 = vmatpush1.msra.mxu0 0.0
    %536 = vmatprep.mubr.f32.mxu0 0.0
    %537 = vmatmul.mubr.f32.gmra.mrb[0].mxu0 %v330
    %v538 = vpop.f32.mrb[0].mxu0
    %v539 = vadd.f32 %v95, %v538
    %v540 = vpop.f32.mrb[0].mxu0
    %541 = vdwg.mxu0
    %v542 = vadd.f32 %v173, %v399
    %v543 = vxor.u32 %v542, 2147483648
    %v544 = vmul.f32 %v543, 1.442695
    %v545 = vpow.pop %v544
    %v546 = vadd.f32 %v545, 1.0
    %v547 = vrcp.pop %v546
    %v548 = vmul.f32 1.0, %v547
    %v549 = vadd.f32 %v249, %v469
    %v550 = vxor.u32 %v549, 2147483648
    %v551 = vmul.f32 %v550, 1.442695
    %v552 = vpow.pop %v551
    %v553 = vadd.f32 %v552, 1.0
    %v554 = vrcp.pop %v553
    %v555 = vmul.f32 1.0, %v554
    %v556 = vmul.f32 %v548, %v539
    %v557 = vadd.f32 %v325, %v556
    %v558 = vtanh.pop %v557
    %v559 = vsub.f32 1.0, %v555
    %v560 = vmul.f32 %v559, %v558
    %v561 = vmul.f32 %v555, 0.0
    %v562 = vadd.f32 %v560, %v561
    %v564 = vsel %vm328, %v562, 0
    %566 = vmatprep.subr.mxu0 0.0
    %567 = vmatpush1.msra.mxu0 %v81
    %568 = vmatprep.subr.mxu0 0.0
    %569 = vmatpush1.msra.mxu0 %v82
    %570 = vmatprep.subr.mxu0 0.0
    %571 = vmatpush1.msra.mxu0 0.0
    %572 = vmatprep.subr.mxu0 0.0
    %573 = vmatpush1.msra.mxu0 0.0
    %574 = vmatprep.subr.mxu0 0.0
    %575 = vmatpush1.msra.mxu0 0.0
    %576 = vmatprep.subr.mxu0 0.0
    %577 = vmatpush1.msra.mxu0 0.0
    %578 = vmatprep.subr.mxu0 0.0
    %579 = vmatpush1.msra.mxu0 0.0
    %580 = vmatprep.subr.mxu0 0.0
    %581 = vmatpush1.msra.mxu0 0.0
    %582 = vmatprep.subr.mxu0 0.0
    %583 = vmatpush1.msra.mxu0 0.0
    %584 = vmatprep.subr.mxu0 0.0
    %585 = vmatpush1.msra.mxu0 0.0
    %586 = vmatprep.subr.mxu0 0.0
    %587 = vmatpush1.msra.mxu0 0.0
    %588 = vmatprep.subr.mxu0 0.0
    %589 = vmatpush1.msra.mxu0 0.0
    %590 = vmatprep.subr.mxu0 0.0
    %591 = vmatpush1.msra.mxu0 0.0
    %592 = vmatprep.subr.mxu0 0.0
    %593 = vmatpush1.msra.mxu0 0.0
    %594 = vmatprep.subr.mxu0 0.0
    %595 = vmatpush1.msra.mxu0 0.0
    %596 = vmatprep.subr.mxu0 0.0
    %597 = vmatpush1.msra.mxu0 0.0
    %598 = vmatprep.subr.mxu0 0.0
    %599 = vmatpush1.msra.mxu0 0.0
    %600 = vmatprep.subr.mxu0 0.0
    %601 = vmatpush1.msra.mxu0 0.0
    %602 = vmatprep.subr.mxu0 0.0
    %603 = vmatpush1.msra.mxu0 0.0
    %604 = vmatprep.subr.mxu0 0.0
    %605 = vmatpush1.msra.mxu0 0.0
    %606 = vmatprep.subr.mxu0 0.0
    %607 = vmatpush1.msra.mxu0 0.0
    %608 = vmatprep.subr.mxu0 0.0
    %609 = vmatpush1.msra.mxu0 0.0
    %610 = vmatprep.subr.mxu0 0.0
    %611 = vmatpush1.msra.mxu0 0.0
    %612 = vmatprep.subr.mxu0 0.0
    %613 = vmatpush1.msra.mxu0 0.0
    %614 = vmatprep.subr.mxu0 0.0
    %615 = vmatpush1.msra.mxu0 0.0
    %616 = vmatprep.subr.mxu0 0.0
    %617 = vmatpush1.msra.mxu0 0.0
    %618 = vmatprep.subr.mxu0 0.0
    %619 = vmatpush1.msra.mxu0 0.0
    %620 = vmatprep.subr.mxu0 0.0
    %621 = vmatpush1.msra.mxu0 0.0
    %622 = vmatprep.subr.mxu0 0.0
    %623 = vmatpush1.msra.mxu0 0.0
    %624 = vmatprep.subr.mxu0 0.0
    %625 = vmatpush1.msra.mxu0 0.0
    %626 = vmatprep.subr.mxu0 0.0
    %627 = vmatpush1.msra.mxu0 0.0
    %628 = vmatprep.subr.mxu0 0.0
    %629 = vmatpush1.msra.mxu0 0.0
    %630 = vmatprep.mubr.f32.mxu0 0.0
    %631 = vmatmul.mubr.f32.gmra.mrb[0].mxu0 %v564
    %v632 = vpop.f32.mrb[0].mxu0
    %v633 = vadd.f32 0.0, %v632
    %v634 = vpop.f32.mrb[0].mxu0
    %635 = vdwg.mxu0
    %636 = vmatprep.subr.mxu0 0.0
    %637 = vmatpush1.msra.mxu0 %v84
    %638 = vmatprep.subr.mxu0 0.0
    %639 = vmatpush1.msra.mxu0 %v85
    %640 = vmatprep.subr.mxu0 0.0
    %641 = vmatpush1.msra.mxu0 0.0
    %642 = vmatprep.subr.mxu0 0.0
    %643 = vmatpush1.msra.mxu0 0.0
    %644 = vmatprep.subr.mxu0 0.0
    %645 = vmatpush1.msra.mxu0 0.0
    %646 = vmatprep.subr.mxu0 0.0
    %647 = vmatpush1.msra.mxu0 0.0
    %648 = vmatprep.subr.mxu0 0.0
    %649 = vmatpush1.msra.mxu0 0.0
    %650 = vmatprep.subr.mxu0 0.0
    %651 = vmatpush1.msra.mxu0 0.0
    %652 = vmatprep.subr.mxu0 0.0
    %653 = vmatpush1.msra.mxu0 0.0
    %654 = vmatprep.subr.mxu0 0.0
    %655 = vmatpush1.msra.mxu0 0.0
    %656 = vmatprep.subr.mxu0 0.0
    %657 = vmatpush1.msra.mxu0 0.0
    %658 = vmatprep.subr.mxu0 0.0
    %659 = vmatpush1.msra.mxu0 0.0
    %660 = vmatprep.subr.mxu0 0.0
    %661 = vmatpush1.msra.mxu0 0.0
    %662 = vmatprep.subr.mxu0 0.0
    %663 = vmatpush1.msra.mxu0 0.0
    %664 = vmatprep.subr.mxu0 0.0
    %665 = vmatpush1.msra.mxu0 0.0
    %666 = vmatprep.subr.mxu0 0.0
    %667 = vmatpush1.msra.mxu0 0.0
    %668 = vmatprep.subr.mxu0 0.0
    %669 = vmatpush1.msra.mxu0 0.0
    %670 = vmatprep.subr.mxu0 0.0
    %671 = vmatpush1.msra.mxu0 0.0
    %672 = vmatprep.subr.mxu0 0.0
    %673 = vmatpush1.msra.mxu0 0.0
    %674 = vmatprep.subr.mxu0 0.0
    %675 = vmatpush1.msra.mxu0 0.0
    %676 = vmatprep.subr.mxu0 0.0
    %677 = vmatpush1.msra.mxu0 0.0
    %678 = vmatprep.subr.mxu0 0.0
    %679 = vmatpush1.msra.mxu0 0.0
    %680 = vmatprep.subr.mxu0 0.0
    %681 = vmatpush1.msra.mxu0 0.0
    %682 = vmatprep.subr.mxu0 0.0
    %683 = vmatpush1.msra.mxu0 0.0
    %684 = vmatprep.subr.mxu0 0.0
    %685 = vmatpush1.msra.mxu0 0.0
    %686 = vmatprep.subr.mxu0 0.0
    %687 = vmatpush1.msra.mxu0 0.0
    %688 = vmatprep.subr.mxu0 0.0
    %689 = vmatpush1.msra.mxu0 0.0
    %690 = vmatprep.subr.mxu0 0.0
    %691 = vmatpush1.msra.mxu0 0.0
    %692 = vmatprep.subr.mxu0 0.0
    %693 = vmatpush1.msra.mxu0 0.0
    %694 = vmatprep.subr.mxu0 0.0
    %695 = vmatpush1.msra.mxu0 0.0
    %696 = vmatprep.subr.mxu0 0.0
    %697 = vmatpush1.msra.mxu0 0.0
    %698 = vmatprep.subr.mxu0 0.0
    %699 = vmatpush1.msra.mxu0 0.0
    %700 = vmatprep.mubr.f32.mxu0 0.0
    %701 = vmatmul.mubr.f32.gmra.mrb[0].mxu0 %v564
    %v702 = vpop.f32.mrb[0].mxu0
    %v703 = vadd.f32 0.0, %v702
    %v704 = vpop.f32.mrb[0].mxu0
    %705 = vdwg.mxu0
    %706 = vmatprep.subr.mxu0 0.0
    %707 = vmatpush1.msra.mxu0 %v87
    %708 = vmatprep.subr.mxu0 0.0
    %709 = vmatpush1.msra.mxu0 %v88
    %710 = vmatprep.subr.mxu0 0.0
    %711 = vmatpush1.msra.mxu0 0.0
    %712 = vmatprep.subr.mxu0 0.0
    %713 = vmatpush1.msra.mxu0 0.0
    %714 = vmatprep.subr.mxu0 0.0
    %715 = vmatpush1.msra.mxu0 0.0
    %716 = vmatprep.subr.mxu0 0.0
    %717 = vmatpush1.msra.mxu0 0.0
    %718 = vmatprep.subr.mxu0 0.0
    %719 = vmatpush1.msra.mxu0 0.0
    %720 = vmatprep.subr.mxu0 0.0
    %721 = vmatpush1.msra.mxu0 0.0
    %722 = vmatprep.subr.mxu0 0.0
    %723 = vmatpush1.msra.mxu0 0.0
    %724 = vmatprep.subr.mxu0 0.0
    %725 = vmatpush1.msra.mxu0 0.0
    %726 = vmatprep.subr.mxu0 0.0
    %727 = vmatpush1.msra.mxu0 0.0
    %728 = vmatprep.subr.mxu0 0.0
    %729 = vmatpush1.msra.mxu0 0.0
    %730 = vmatprep.subr.mxu0 0.0
    %731 = vmatpush1.msra.mxu0 0.0
    %732 = vmatprep.subr.mxu0 0.0
    %733 = vmatpush1.msra.mxu0 0.0
    %734 = vmatprep.subr.mxu0 0.0
    %735 = vmatpush1.msra.mxu0 0.0
    %736 = vmatprep.subr.mxu0 0.0
    %737 = vmatpush1.msra.mxu0 0.0
    %738 = vmatprep.subr.mxu0 0.0
    %739 = vmatpush1.msra.mxu0 0.0
    %740 = vmatprep.subr.mxu0 0.0
    %741 = vmatpush1.msra.mxu0 0.0
    %742 = vmatprep.subr.mxu0 0.0
    %743 = vmatpush1.msra.mxu0 0.0
    %744 = vmatprep.subr.mxu0 0.0
    %745 = vmatpush1.msra.mxu0 0.0
    %746 = vmatprep.subr.mxu0 0.0
    %747 = vmatpush1.msra.mxu0 0.0
    %748 = vmatprep.subr.mxu0 0.0
    %749 = vmatpush1.msra.mxu0 0.0
    %750 = vmatprep.subr.mxu0 0.0
    %751 = vmatpush1.msra.mxu0 0.0
    %752 = vmatprep.subr.mxu0 0.0
    %753 = vmatpush1.msra.mxu0 0.0
    %754 = vmatprep.subr.mxu0 0.0
    %755 = vmatpush1.msra.mxu0 0.0
    %756 = vmatprep.subr.mxu0 0.0
    %757 = vmatpush1.msra.mxu0 0.0
    %758 = vmatprep.subr.mxu0 0.0
    %759 = vmatpush1.msra.mxu0 0.0
    %760 = vmatprep.subr.mxu0 0.0
    %761 = vmatpush1.msra.mxu0 0.0
    %762 = vmatprep.subr.mxu0 0.0
    %763 = vmatpush1.msra.mxu0 0.0
    %764 = vmatprep.subr.mxu0 0.0
    %765 = vmatpush1.msra.mxu0 0.0
    %766 = vmatprep.subr.mxu0 0.0
    %767 = vmatpush1.msra.mxu0 0.0
    %768 = vmatprep.subr.mxu0 0.0
    %769 = vmatpush1.msra.mxu0 0.0
    %770 = vmatprep.mubr.f32.mxu0 0.0
    %771 = vmatmul.mubr.f32.gmra.mrb[0].mxu0 %v564
    %v772 = vpop.f32.mrb[0].mxu0
    %v773 = vadd.f32 %v95, %v772
    %v774 = vpop.f32.mrb[0].mxu0
    %775 = vdwg.mxu0
    %v777 = vrot.slane %v633, 7
    %v779 = vadd.f32 %v173, %v777
    %v780 = vxor.u32 %v779, 2147483648
    %v781 = vmul.f32 %v780, 1.442695
    %v782 = vpow.pop %v781
    %v783 = vadd.f32 %v782, 1.0
    %v784 = vrcp.pop %v783
    %v785 = vmul.f32 1.0, %v784
    %v787 = vrot.slane %v703, 7
    %v789 = vadd.f32 %v249, %v787
    %v790 = vxor.u32 %v789, 2147483648
    %v791 = vmul.f32 %v790, 1.442695
    %v792 = vpow.pop %v791
    %v793 = vadd.f32 %v792, 1.0
    %v794 = vrcp.pop %v793
    %v795 = vmul.f32 1.0, %v794
    %v797 = vrot.slane %v773, 7
    %v799 = vmul.f32 %v785, %v797
    %v800 = vadd.f32 %v325, %v799
    %v801 = vtanh.pop %v800
    %v802 = vsub.f32 1.0, %v795
    %v803 = vmul.f32 %v802, %v801
    %v804 = vrot.slane %v562, 7
    %v806 = vmul.f32 %v795, %v804
    %v807 = vadd.f32 %v803, %v806
    %vm808 = vcmask 1040384
    %v809 = vsel %vm808, %v562, %v807
    %v810 = vld [vmem:[%s5] sm:$0xff]
    %v811 = vld [vmem:[%s5 + $0x8] sm:$0xff]
    %s812 = scalar_lea.vmem %s5, 16
    %v813 = vld [vmem:[%s812] sm:$0xff]
    %v814 = vld [vmem:[%s812 + $0x8] sm:$0xff]
    %s815 = scalar_lea.vmem %s5, 32
    %v816 = vld [vmem:[%s815] sm:$0xff]
    %v817 = vld [vmem:[%s815 + $0x8] sm:$0xff]
    %v818 = vld [vmem:[%s6] sm:$0xff]
    %v819 = vld [vmem:[%s6 + $0x8] sm:$0xff]
    %s820 = scalar_lea.vmem %s6, 16
    %v821 = vld [vmem:[%s820] sm:$0xff]
    %v822 = vld [vmem:[%s820 + $0x8] sm:$0xff]
    %s823 = scalar_lea.vmem %s6, 32
    %v824 = vld [vmem:[%s823] sm:$0xff]
    %v825 = vld [vmem:[%s823 + $0x8] sm:$0xff]
    %v826 = vld [vmem:[%s7] sm:$0x1]
    %s827 = scalar_lea.vmem %s7, 1
    %v828 = vld [vmem:[%s827] sm:$0x1]
    %s829 = scalar_lea.vmem %s7, 2
    %v830 = vld [vmem:[%s829] sm:$0x1]
    %s831 = scalar_lea.vmem %s7, 3
    %v832 = vld [vmem:[%s831] sm:$0x1]
    %v834 = vlaneseq
    %v835 = vshrl.u32 %v834, 7
    %v836 = vsub.s32 0, %v835
    %v837 = vrot.slane %v826, %v836
    %v840 = vsel %vm328, %v809, 0
    %842 = vmatprep.subr.mxu0 0.0
    %843 = vmatpush1.msra.mxu0 %v810
    %844 = vmatprep.subr.mxu0 0.0
    %845 = vmatpush1.msra.mxu0 %v811
    %846 = vmatprep.subr.mxu0 0.0
    %847 = vmatpush1.msra.mxu0 0.0
    %848 = vmatprep.subr.mxu0 0.0
    %849 = vmatpush1.msra.mxu0 0.0
    %850 = vmatprep.subr.mxu0 0.0
    %851 = vmatpush1.msra.mxu0 0.0
    %852 = vmatprep.subr.mxu0 0.0
    %853 = vmatpush1.msra.mxu0 0.0
    %854 = vmatprep.subr.mxu0 0.0
    %855 = vmatpush1.msra.mxu0 0.0
    %856 = vmatprep.subr.mxu0 0.0
    %857 = vmatpush1.msra.mxu0 0.0
    %858 = vmatprep.subr.mxu0 0.0
    %859 = vmatpush1.msra.mxu0 0.0
    %860 = vmatprep.subr.mxu0 0.0
    %861 = vmatpush1.msra.mxu0 0.0
    %862 = vmatprep.subr.mxu0 0.0
    %863 = vmatpush1.msra.mxu0 0.0
    %864 = vmatprep.subr.mxu0 0.0
    %865 = vmatpush1.msra.mxu0 0.0
    %866 = vmatprep.subr.mxu0 0.0
    %867 = vmatpush1.msra.mxu0 0.0
    %868 = vmatprep.subr.mxu0 0.0
    %869 = vmatpush1.msra.mxu0 0.0
    %870 = vmatprep.subr.mxu0 0.0
    %871 = vmatpush1.msra.mxu0 0.0
    %872 = vmatprep.subr.mxu0 0.0
    %873 = vmatpush1.msra.mxu0 0.0
    %874 = vmatprep.subr.mxu0 0.0
    %875 = vmatpush1.msra.mxu0 0.0
    %876 = vmatprep.subr.mxu0 0.0
    %877 = vmatpush1.msra.mxu0 0.0
    %878 = vmatprep.subr.mxu0 0.0
    %879 = vmatpush1.msra.mxu0 0.0
    %880 = vmatprep.subr.mxu0 0.0
    %881 = vmatpush1.msra.mxu0 0.0
    %882 = vmatprep.subr.mxu0 0.0
    %883 = vmatpush1.msra.mxu0 0.0
    %884 = vmatprep.subr.mxu0 0.0
    %885 = vmatpush1.msra.mxu0 0.0
    %886 = vmatprep.subr.mxu0 0.0
    %887 = vmatpush1.msra.mxu0 0.0
    %888 = vmatprep.subr.mxu0 0.0
    %889 = vmatpush1.msra.mxu0 0.0
    %890 = vmatprep.subr.mxu0 0.0
    %891 = vmatpush1.msra.mxu0 0.0
    %892 = vmatprep.subr.mxu0 0.0
    %893 = vmatpush1.msra.mxu0 0.0
    %894 = vmatprep.subr.mxu0 0.0
    %895 = vmatpush1.msra.mxu0 0.0
    %896 = vmatprep.subr.mxu0 0.0
    %897 = vmatpush1.msra.mxu0 0.0
    %898 = vmatprep.subr.mxu0 0.0
    %899 = vmatpush1.msra.mxu0 0.0
    %900 = vmatprep.subr.mxu0 0.0
    %901 = vmatpush1.msra.mxu0 0.0
    %902 = vmatprep.subr.mxu0 0.0
    %903 = vmatpush1.msra.mxu0 0.0
    %904 = vmatprep.subr.mxu0 0.0
    %905 = vmatpush1.msra.mxu0 0.0
    %906 = vmatprep.mubr.f32.mxu0 0.0
    %907 = vmatmul.mubr.f32.gmra.mrb[0].mxu0 %v840
    %v908 = vpop.f32.mrb[0].mxu0
    %v909 = vadd.f32 %v837, %v908
    %v910 = vpop.f32.mrb[0].mxu0
    %911 = vdwg.mxu0
    %v913 = vlaneseq
    %v914 = vshrl.u32 %v913, 7
    %v915 = vsub.s32 0, %v914
    %v916 = vrot.slane %v828, %v915
    %918 = vmatprep.subr.mxu0 0.0
    %919 = vmatpush1.msra.mxu0 %v813
    %920 = vmatprep.subr.mxu0 0.0
    %921 = vmatpush1.msra.mxu0 %v814
    %922 = vmatprep.subr.mxu0 0.0
    %923 = vmatpush1.msra.mxu0 0.0
    %924 = vmatprep.subr.mxu0 0.0
    %925 = vmatpush1.msra.mxu0 0.0
    %926 = vmatprep.subr.mxu0 0.0
    %927 = vmatpush1.msra.mxu0 0.0
    %928 = vmatprep.subr.mxu0 0.0
    %929 = vmatpush1.msra.mxu0 0.0
    %930 = vmatprep.subr.mxu0 0.0
    %931 = vmatpush1.msra.mxu0 0.0
    %932 = vmatprep.subr.mxu0 0.0
    %933 = vmatpush1.msra.mxu0 0.0
    %934 = vmatprep.subr.mxu0 0.0
    %935 = vmatpush1.msra.mxu0 0.0
    %936 = vmatprep.subr.mxu0 0.0
    %937 = vmatpush1.msra.mxu0 0.0
    %938 = vmatprep.subr.mxu0 0.0
    %939 = vmatpush1.msra.mxu0 0.0
    %940 = vmatprep.subr.mxu0 0.0
    %941 = vmatpush1.msra.mxu0 0.0
    %942 = vmatprep.subr.mxu0 0.0
    %943 = vmatpush1.msra.mxu0 0.0
    %944 = vmatprep.subr.mxu0 0.0
    %945 = vmatpush1.msra.mxu0 0.0
    %946 = vmatprep.subr.mxu0 0.0
    %947 = vmatpush1.msra.mxu0 0.0
    %948 = vmatprep.subr.mxu0 0.0
    %949 = vmatpush1.msra.mxu0 0.0
    %950 = vmatprep.subr.mxu0 0.0
    %951 = vmatpush1.msra.mxu0 0.0
    %952 = vmatprep.subr.mxu0 0.0
    %953 = vmatpush1.msra.mxu0 0.0
    %954 = vmatprep.subr.mxu0 0.0
    %955 = vmatpush1.msra.mxu0 0.0
    %956 = vmatprep.subr.mxu0 0.0
    %957 = vmatpush1.msra.mxu0 0.0
    %958 = vmatprep.subr.mxu0 0.0
    %959 = vmatpush1.msra.mxu0 0.0
    %960 = vmatprep.subr.mxu0 0.0
    %961 = vmatpush1.msra.mxu0 0.0
    %962 = vmatprep.subr.mxu0 0.0
    %963 = vmatpush1.msra.mxu0 0.0
    %964 = vmatprep.subr.mxu0 0.0
    %965 = vmatpush1.msra.mxu0 0.0
    %966 = vmatprep.subr.mxu0 0.0
    %967 = vmatpush1.msra.mxu0 0.0
    %968 = vmatprep.subr.mxu0 0.0
    %969 = vmatpush1.msra.mxu0 0.0
    %970 = vmatprep.subr.mxu0 0.0
    %971 = vmatpush1.msra.mxu0 0.0
    %972 = vmatprep.subr.mxu0 0.0
    %973 = vmatpush1.msra.mxu0 0.0
    %974 = vmatprep.subr.mxu0 0.0
    %975 = vmatpush1.msra.mxu0 0.0
    %976 = vmatprep.subr.mxu0 0.0
    %977 = vmatpush1.msra.mxu0 0.0
    %978 = vmatprep.subr.mxu0 0.0
    %979 = vmatpush1.msra.mxu0 0.0
    %980 = vmatprep.subr.mxu0 0.0
    %981 = vmatpush1.msra.mxu0 0.0
    %982 = vmatprep.mubr.f32.mxu0 0.0
    %983 = vmatmul.mubr.f32.gmra.mrb[0].mxu0 %v840
    %v984 = vpop.f32.mrb[0].mxu0
    %v985 = vadd.f32 %v916, %v984
    %v986 = vpop.f32.mrb[0].mxu0
    %987 = vdwg.mxu0
    %v989 = vlaneseq
    %v990 = vshrl.u32 %v989, 7
    %v991 = vsub.s32 0, %v990
    %v992 = vrot.slane %v830, %v991
    %994 = vmatprep.subr.mxu0 0.0
    %995 = vmatpush1.msra.mxu0 %v816
    %996 = vmatprep.subr.mxu0 0.0
    %997 = vmatpush1.msra.mxu0 %v817
    %998 = vmatprep.subr.mxu0 0.0
    %999 = vmatpush1.msra.mxu0 0.0
    %1000 = vmatprep.subr.mxu0 0.0
    %1001 = vmatpush1.msra.mxu0 0.0
    %1002 = vmatprep.subr.mxu0 0.0
    %1003 = vmatpush1.msra.mxu0 0.0
    %1004 = vmatprep.subr.mxu0 0.0
    %1005 = vmatpush1.msra.mxu0 0.0
    %1006 = vmatprep.subr.mxu0 0.0
    %1007 = vmatpush1.msra.mxu0 0.0
    %1008 = vmatprep.subr.mxu0 0.0
    %1009 = vmatpush1.msra.mxu0 0.0
    %1010 = vmatprep.subr.mxu0 0.0
    %1011 = vmatpush1.msra.mxu0 0.0
    %1012 = vmatprep.subr.mxu0 0.0
    %1013 = vmatpush1.msra.mxu0 0.0
    %1014 = vmatprep.subr.mxu0 0.0
    %1015 = vmatpush1.msra.mxu0 0.0
    %1016 = vmatprep.subr.mxu0 0.0
    %1017 = vmatpush1.msra.mxu0 0.0
    %1018 = vmatprep.subr.mxu0 0.0
    %1019 = vmatpush1.msra.mxu0 0.0
    %1020 = vmatprep.subr.mxu0 0.0
    %1021 = vmatpush1.msra.mxu0 0.0
    %1022 = vmatprep.subr.mxu0 0.0
    %1023 = vmatpush1.msra.mxu0 0.0
    %1024 = vmatprep.subr.mxu0 0.0
    %1025 = vmatpush1.msra.mxu0 0.0
    %1026 = vmatprep.subr.mxu0 0.0
    %1027 = vmatpush1.msra.mxu0 0.0
    %1028 = vmatprep.subr.mxu0 0.0
    %1029 = vmatpush1.msra.mxu0 0.0
    %1030 = vmatprep.subr.mxu0 0.0
    %1031 = vmatpush1.msra.mxu0 0.0
    %1032 = vmatprep.subr.mxu0 0.0
    %1033 = vmatpush1.msra.mxu0 0.0
    %1034 = vmatprep.subr.mxu0 0.0
    %1035 = vmatpush1.msra.mxu0 0.0
    %1036 = vmatprep.subr.mxu0 0.0
    %1037 = vmatpush1.msra.mxu0 0.0
    %1038 = vmatprep.subr.mxu0 0.0
    %1039 = vmatpush1.msra.mxu0 0.0
    %1040 = vmatprep.subr.mxu0 0.0
    %1041 = vmatpush1.msra.mxu0 0.0
    %1042 = vmatprep.subr.mxu0 0.0
    %1043 = vmatpush1.msra.mxu0 0.0
    %1044 = vmatprep.subr.mxu0 0.0
    %1045 = vmatpush1.msra.mxu0 0.0
    %1046 = vmatprep.subr.mxu0 0.0
    %1047 = vmatpush1.msra.mxu0 0.0
    %1048 = vmatprep.subr.mxu0 0.0
    %1049 = vmatpush1.msra.mxu0 0.0
    %1050 = vmatprep.subr.mxu0 0.0
    %1051 = vmatpush1.msra.mxu0 0.0
    %1052 = vmatprep.subr.mxu0 0.0
    %1053 = vmatpush1.msra.mxu0 0.0
    %1054 = vmatprep.subr.mxu0 0.0
    %1055 = vmatpush1.msra.mxu0 0.0
    %1056 = vmatprep.subr.mxu0 0.0
    %1057 = vmatpush1.msra.mxu0 0.0
    %1058 = vmatprep.mubr.f32.mxu0 0.0
    %1059 = vmatmul.mubr.f32.gmra.mrb[0].mxu0 %v840
    %v1060 = vpop.f32.mrb[0].mxu0
    %v1061 = vadd.f32 %v992, %v1060
    %v1062 = vpop.f32.mrb[0].mxu0
    %1063 = vdwg.mxu0
    %1064 = vmatprep.subr.mxu0 0.0
    %1065 = vmatpush1.msra.mxu0 %v818
    %1066 = vmatprep.subr.mxu0 0.0
    %1067 = vmatpush1.msra.mxu0 %v819
    %1068 = vmatprep.subr.mxu0 0.0
    %1069 = vmatpush1.msra.mxu0 0.0
    %1070 = vmatprep.subr.mxu0 0.0
    %1071 = vmatpush1.msra.mxu0 0.0
    %1072 = vmatprep.subr.mxu0 0.0
    %1073 = vmatpush1.msra.mxu0 0.0
    %1074 = vmatprep.subr.mxu0 0.0
    %1075 = vmatpush1.msra.mxu0 0.0
    %1076 = vmatprep.subr.mxu0 0.0
    %1077 = vmatpush1.msra.mxu0 0.0
    %1078 = vmatprep.subr.mxu0 0.0
    %1079 = vmatpush1.msra.mxu0 0.0
    %1080 = vmatprep.subr.mxu0 0.0
    %1081 = vmatpush1.msra.mxu0 0.0
    %1082 = vmatprep.subr.mxu0 0.0
    %1083 = vmatpush1.msra.mxu0 0.0
    %1084 = vmatprep.subr.mxu0 0.0
    %1085 = vmatpush1.msra.mxu0 0.0
    %1086 = vmatprep.subr.mxu0 0.0
    %1087 = vmatpush1.msra.mxu0 0.0
    %1088 = vmatprep.subr.mxu0 0.0
    %1089 = vmatpush1.msra.mxu0 0.0
    %1090 = vmatprep.subr.mxu0 0.0
    %1091 = vmatpush1.msra.mxu0 0.0
    %1092 = vmatprep.subr.mxu0 0.0
    %1093 = vmatpush1.msra.mxu0 0.0
    %1094 = vmatprep.subr.mxu0 0.0
    %1095 = vmatpush1.msra.mxu0 0.0
    %1096 = vmatprep.subr.mxu0 0.0
    %1097 = vmatpush1.msra.mxu0 0.0
    %1098 = vmatprep.subr.mxu0 0.0
    %1099 = vmatpush1.msra.mxu0 0.0
    %1100 = vmatprep.subr.mxu0 0.0
    %1101 = vmatpush1.msra.mxu0 0.0
    %1102 = vmatprep.subr.mxu0 0.0
    %1103 = vmatpush1.msra.mxu0 0.0
    %1104 = vmatprep.subr.mxu0 0.0
    %1105 = vmatpush1.msra.mxu0 0.0
    %1106 = vmatprep.subr.mxu0 0.0
    %1107 = vmatpush1.msra.mxu0 0.0
    %1108 = vmatprep.subr.mxu0 0.0
    %1109 = vmatpush1.msra.mxu0 0.0
    %1110 = vmatprep.subr.mxu0 0.0
    %1111 = vmatpush1.msra.mxu0 0.0
    %1112 = vmatprep.subr.mxu0 0.0
    %1113 = vmatpush1.msra.mxu0 0.0
    %1114 = vmatprep.subr.mxu0 0.0
    %1115 = vmatpush1.msra.mxu0 0.0
    %1116 = vmatprep.subr.mxu0 0.0
    %1117 = vmatpush1.msra.mxu0 0.0
    %1118 = vmatprep.subr.mxu0 0.0
    %1119 = vmatpush1.msra.mxu0 0.0
    %1120 = vmatprep.subr.mxu0 0.0
    %1121 = vmatpush1.msra.mxu0 0.0
    %1122 = vmatprep.subr.mxu0 0.0
    %1123 = vmatpush1.msra.mxu0 0.0
    %1124 = vmatprep.subr.mxu0 0.0
    %1125 = vmatpush1.msra.mxu0 0.0
    %1126 = vmatprep.subr.mxu0 0.0
    %1127 = vmatpush1.msra.mxu0 0.0
    %1128 = vmatprep.mubr.f32.mxu0 0.0
    %1129 = vmatmul.mubr.f32.gmra.mrb[0].mxu0 %v330
    %v1130 = vpop.f32.mrb[0].mxu0
    %v1131 = vadd.f32 0.0, %v1130
    %v1132 = vpop.f32.mrb[0].mxu0
    %1133 = vdwg.mxu0
    %1134 = vmatprep.subr.mxu0 0.0
    %1135 = vmatpush1.msra.mxu0 %v821
    %1136 = vmatprep.subr.mxu0 0.0
    %1137 = vmatpush1.msra.mxu0 %v822
    %1138 = vmatprep.subr.mxu0 0.0
    %1139 = vmatpush1.msra.mxu0 0.0
    %1140 = vmatprep.subr.mxu0 0.0
    %1141 = vmatpush1.msra.mxu0 0.0
    %1142 = vmatprep.subr.mxu0 0.0
    %1143 = vmatpush1.msra.mxu0 0.0
    %1144 = vmatprep.subr.mxu0 0.0
    %1145 = vmatpush1.msra.mxu0 0.0
    %1146 = vmatprep.subr.mxu0 0.0
    %1147 = vmatpush1.msra.mxu0 0.0
    %1148 = vmatprep.subr.mxu0 0.0
    %1149 = vmatpush1.msra.mxu0 0.0
    %1150 = vmatprep.subr.mxu0 0.0
    %1151 = vmatpush1.msra.mxu0 0.0
    %1152 = vmatprep.subr.mxu0 0.0
    %1153 = vmatpush1.msra.mxu0 0.0
    %1154 = vmatprep.subr.mxu0 0.0
    %1155 = vmatpush1.msra.mxu0 0.0
    %1156 = vmatprep.subr.mxu0 0.0
    %1157 = vmatpush1.msra.mxu0 0.0
    %1158 = vmatprep.subr.mxu0 0.0
    %1159 = vmatpush1.msra.mxu0 0.0
    %1160 = vmatprep.subr.mxu0 0.0
    %1161 = vmatpush1.msra.mxu0 0.0
    %1162 = vmatprep.subr.mxu0 0.0
    %1163 = vmatpush1.msra.mxu0 0.0
    %1164 = vmatprep.subr.mxu0 0.0
    %1165 = vmatpush1.msra.mxu0 0.0
    %1166 = vmatprep.subr.mxu0 0.0
    %1167 = vmatpush1.msra.mxu0 0.0
    %1168 = vmatprep.subr.mxu0 0.0
    %1169 = vmatpush1.msra.mxu0 0.0
    %1170 = vmatprep.subr.mxu0 0.0
    %1171 = vmatpush1.msra.mxu0 0.0
    %1172 = vmatprep.subr.mxu0 0.0
    %1173 = vmatpush1.msra.mxu0 0.0
    %1174 = vmatprep.subr.mxu0 0.0
    %1175 = vmatpush1.msra.mxu0 0.0
    %1176 = vmatprep.subr.mxu0 0.0
    %1177 = vmatpush1.msra.mxu0 0.0
    %1178 = vmatprep.subr.mxu0 0.0
    %1179 = vmatpush1.msra.mxu0 0.0
    %1180 = vmatprep.subr.mxu0 0.0
    %1181 = vmatpush1.msra.mxu0 0.0
    %1182 = vmatprep.subr.mxu0 0.0
    %1183 = vmatpush1.msra.mxu0 0.0
    %1184 = vmatprep.subr.mxu0 0.0
    %1185 = vmatpush1.msra.mxu0 0.0
    %1186 = vmatprep.subr.mxu0 0.0
    %1187 = vmatpush1.msra.mxu0 0.0
    %1188 = vmatprep.subr.mxu0 0.0
    %1189 = vmatpush1.msra.mxu0 0.0
    %1190 = vmatprep.subr.mxu0 0.0
    %1191 = vmatpush1.msra.mxu0 0.0
    %1192 = vmatprep.subr.mxu0 0.0
    %1193 = vmatpush1.msra.mxu0 0.0
    %1194 = vmatprep.subr.mxu0 0.0
    %1195 = vmatpush1.msra.mxu0 0.0
    %1196 = vmatprep.subr.mxu0 0.0
    %1197 = vmatpush1.msra.mxu0 0.0
    %1198 = vmatprep.mubr.f32.mxu0 0.0
    %1199 = vmatmul.mubr.f32.gmra.mrb[0].mxu0 %v330
    %v1200 = vpop.f32.mrb[0].mxu0
    %v1201 = vadd.f32 0.0, %v1200
    %v1202 = vpop.f32.mrb[0].mxu0
    %1203 = vdwg.mxu0
    %1204 = vmatprep.subr.mxu0 0.0
    %1205 = vmatpush1.msra.mxu0 %v824
    %1206 = vmatprep.subr.mxu0 0.0
    %1207 = vmatpush1.msra.mxu0 %v825
    %1208 = vmatprep.subr.mxu0 0.0
    %1209 = vmatpush1.msra.mxu0 0.0
    %1210 = vmatprep.subr.mxu0 0.0
    %1211 = vmatpush1.msra.mxu0 0.0
    %1212 = vmatprep.subr.mxu0 0.0
    %1213 = vmatpush1.msra.mxu0 0.0
    %1214 = vmatprep.subr.mxu0 0.0
    %1215 = vmatpush1.msra.mxu0 0.0
    %1216 = vmatprep.subr.mxu0 0.0
    %1217 = vmatpush1.msra.mxu0 0.0
    %1218 = vmatprep.subr.mxu0 0.0
    %1219 = vmatpush1.msra.mxu0 0.0
    %1220 = vmatprep.subr.mxu0 0.0
    %1221 = vmatpush1.msra.mxu0 0.0
    %1222 = vmatprep.subr.mxu0 0.0
    %1223 = vmatpush1.msra.mxu0 0.0
    %1224 = vmatprep.subr.mxu0 0.0
    %1225 = vmatpush1.msra.mxu0 0.0
    %1226 = vmatprep.subr.mxu0 0.0
    %1227 = vmatpush1.msra.mxu0 0.0
    %1228 = vmatprep.subr.mxu0 0.0
    %1229 = vmatpush1.msra.mxu0 0.0
    %1230 = vmatprep.subr.mxu0 0.0
    %1231 = vmatpush1.msra.mxu0 0.0
    %1232 = vmatprep.subr.mxu0 0.0
    %1233 = vmatpush1.msra.mxu0 0.0
    %1234 = vmatprep.subr.mxu0 0.0
    %1235 = vmatpush1.msra.mxu0 0.0
    %1236 = vmatprep.subr.mxu0 0.0
    %1237 = vmatpush1.msra.mxu0 0.0
    %1238 = vmatprep.subr.mxu0 0.0
    %1239 = vmatpush1.msra.mxu0 0.0
    %1240 = vmatprep.subr.mxu0 0.0
    %1241 = vmatpush1.msra.mxu0 0.0
    %1242 = vmatprep.subr.mxu0 0.0
    %1243 = vmatpush1.msra.mxu0 0.0
    %1244 = vmatprep.subr.mxu0 0.0
    %1245 = vmatpush1.msra.mxu0 0.0
    %1246 = vmatprep.subr.mxu0 0.0
    %1247 = vmatpush1.msra.mxu0 0.0
    %1248 = vmatprep.subr.mxu0 0.0
    %1249 = vmatpush1.msra.mxu0 0.0
    %1250 = vmatprep.subr.mxu0 0.0
    %1251 = vmatpush1.msra.mxu0 0.0
    %1252 = vmatprep.subr.mxu0 0.0
    %1253 = vmatpush1.msra.mxu0 0.0
    %1254 = vmatprep.subr.mxu0 0.0
    %1255 = vmatpush1.msra.mxu0 0.0
    %1256 = vmatprep.subr.mxu0 0.0
    %1257 = vmatpush1.msra.mxu0 0.0
    %1258 = vmatprep.subr.mxu0 0.0
    %1259 = vmatpush1.msra.mxu0 0.0
    %1260 = vmatprep.subr.mxu0 0.0
    %1261 = vmatpush1.msra.mxu0 0.0
    %1262 = vmatprep.subr.mxu0 0.0
    %1263 = vmatpush1.msra.mxu0 0.0
    %1264 = vmatprep.subr.mxu0 0.0
    %1265 = vmatpush1.msra.mxu0 0.0
    %1266 = vmatprep.subr.mxu0 0.0
    %1267 = vmatpush1.msra.mxu0 0.0
    %1268 = vmatprep.mubr.f32.mxu0 0.0
    %1269 = vmatmul.mubr.f32.gmra.mrb[0].mxu0 %v330
    %v1270 = vpop.f32.mrb[0].mxu0
    %v1271 = vadd.f32 %v832, %v1270
    %v1272 = vpop.f32.mrb[0].mxu0
    %1273 = vdwg.mxu0
    %v1274 = vadd.f32 %v909, %v1131
    %v1275 = vxor.u32 %v1274, 2147483648
    %v1276 = vmul.f32 %v1275, 1.442695
    %v1277 = vpow.pop %v1276
    %v1278 = vadd.f32 %v1277, 1.0
    %v1279 = vrcp.pop %v1278
    %v1280 = vmul.f32 1.0, %v1279
    %v1281 = vadd.f32 %v985, %v1201
    %v1282 = vxor.u32 %v1281, 2147483648
    %v1283 = vmul.f32 %v1282, 1.442695
    %v1284 = vpow.pop %v1283
    %v1285 = vadd.f32 %v1284, 1.0
    %v1286 = vrcp.pop %v1285
    %v1287 = vmul.f32 1.0, %v1286
    %v1288 = vmul.f32 %v1280, %v1271
    %v1289 = vadd.f32 %v1061, %v1288
    %v1290 = vtanh.pop %v1289
    %v1291 = vsub.f32 1.0, %v1287
    %v1292 = vmul.f32 %v1291, %v1290
    %v1293 = vmul.f32 %v1287, 0.0
    %v1294 = vadd.f32 %v1292, %v1293
    %v1296 = vsel %vm328, %v1294, 0
    %1298 = vmatprep.subr.mxu0 0.0
    %1299 = vmatpush1.msra.mxu0 %v818
    %1300 = vmatprep.subr.mxu0 0.0
    %1301 = vmatpush1.msra.mxu0 %v819
    %1302 = vmatprep.subr.mxu0 0.0
    %1303 = vmatpush1.msra.mxu0 0.0
    %1304 = vmatprep.subr.mxu0 0.0
    %1305 = vmatpush1.msra.mxu0 0.0
    %1306 = vmatprep.subr.mxu0 0.0
    %1307 = vmatpush1.msra.mxu0 0.0
    %1308 = vmatprep.subr.mxu0 0.0
    %1309 = vmatpush1.msra.mxu0 0.0
    %1310 = vmatprep.subr.mxu0 0.0
    %1311 = vmatpush1.msra.mxu0 0.0
    %1312 = vmatprep.subr.mxu0 0.0
    %1313 = vmatpush1.msra.mxu0 0.0
    %1314 = vmatprep.subr.mxu0 0.0
    %1315 = vmatpush1.msra.mxu0 0.0
    %1316 = vmatprep.subr.mxu0 0.0
    %1317 = vmatpush1.msra.mxu0 0.0
    %1318 = vmatprep.subr.mxu0 0.0
    %1319 = vmatpush1.msra.mxu0 0.0
    %1320 = vmatprep.subr.mxu0 0.0
    %1321 = vmatpush1.msra.mxu0 0.0
    %1322 = vmatprep.subr.mxu0 0.0
    %1323 = vmatpush1.msra.mxu0 0.0
    %1324 = vmatprep.subr.mxu0 0.0
    %1325 = vmatpush1.msra.mxu0 0.0
    %1326 = vmatprep.subr.mxu0 0.0
    %1327 = vmatpush1.msra.mxu0 0.0
    %1328 = vmatprep.subr.mxu0 0.0
    %1329 = vmatpush1.msra.mxu0 0.0
    %1330 = vmatprep.subr.mxu0 0.0
    %1331 = vmatpush1.msra.mxu0 0.0
    %1332 = vmatprep.subr.mxu0 0.0
    %1333 = vmatpush1.msra.mxu0 0.0
    %1334 = vmatprep.subr.mxu0 0.0
    %1335 = vmatpush1.msra.mxu0 0.0
    %1336 = vmatprep.subr.mxu0 0.0
    %1337 = vmatpush1.msra.mxu0 0.0
    %1338 = vmatprep.subr.mxu0 0.0
    %1339 = vmatpush1.msra.mxu0 0.0
    %1340 = vmatprep.subr.mxu0 0.0
    %1341 = vmatpush1.msra.mxu0 0.0
    %1342 = vmatprep.subr.mxu0 0.0
    %1343 = vmatpush1.msra.mxu0 0.0
    %1344 = vmatprep.subr.mxu0 0.0
    %1345 = vmatpush1.msra.mxu0 0.0
    %1346 = vmatprep.subr.mxu0 0.0
    %1347 = vmatpush1.msra.mxu0 0.0
    %1348 = vmatprep.subr.mxu0 0.0
    %1349 = vmatpush1.msra.mxu0 0.0
    %1350 = vmatprep.subr.mxu0 0.0
    %1351 = vmatpush1.msra.mxu0 0.0
    %1352 = vmatprep.subr.mxu0 0.0
    %1353 = vmatpush1.msra.mxu0 0.0
    %1354 = vmatprep.subr.mxu0 0.0
    %1355 = vmatpush1.msra.mxu0 0.0
    %1356 = vmatprep.subr.mxu0 0.0
    %1357 = vmatpush1.msra.mxu0 0.0
    %1358 = vmatprep.subr.mxu0 0.0
    %1359 = vmatpush1.msra.mxu0 0.0
    %1360 = vmatprep.subr.mxu0 0.0
    %1361 = vmatpush1.msra.mxu0 0.0
    %1362 = vmatprep.mubr.f32.mxu0 0.0
    %1363 = vmatmul.mubr.f32.gmra.mrb[0].mxu0 %v1296
    %v1364 = vpop.f32.mrb[0].mxu0
    %v1365 = vadd.f32 0.0, %v1364
    %v1366 = vpop.f32.mrb[0].mxu0
    %1367 = vdwg.mxu0
    %1368 = vmatprep.subr.mxu0 0.0
    %1369 = vmatpush1.msra.mxu0 %v821
    %1370 = vmatprep.subr.mxu0 0.0
    %1371 = vmatpush1.msra.mxu0 %v822
    %1372 = vmatprep.subr.mxu0 0.0
    %1373 = vmatpush1.msra.mxu0 0.0
    %1374 = vmatprep.subr.mxu0 0.0
    %1375 = vmatpush1.msra.mxu0 0.0
    %1376 = vmatprep.subr.mxu0 0.0
    %1377 = vmatpush1.msra.mxu0 0.0
    %1378 = vmatprep.subr.mxu0 0.0
    %1379 = vmatpush1.msra.mxu0 0.0
    %1380 = vmatprep.subr.mxu0 0.0
    %1381 = vmatpush1.msra.mxu0 0.0
    %1382 = vmatprep.subr.mxu0 0.0
    %1383 = vmatpush1.msra.mxu0 0.0
    %1384 = vmatprep.subr.mxu0 0.0
    %1385 = vmatpush1.msra.mxu0 0.0
    %1386 = vmatprep.subr.mxu0 0.0
    %1387 = vmatpush1.msra.mxu0 0.0
    %1388 = vmatprep.subr.mxu0 0.0
    %1389 = vmatpush1.msra.mxu0 0.0
    %1390 = vmatprep.subr.mxu0 0.0
    %1391 = vmatpush1.msra.mxu0 0.0
    %1392 = vmatprep.subr.mxu0 0.0
    %1393 = vmatpush1.msra.mxu0 0.0
    %1394 = vmatprep.subr.mxu0 0.0
    %1395 = vmatpush1.msra.mxu0 0.0
    %1396 = vmatprep.subr.mxu0 0.0
    %1397 = vmatpush1.msra.mxu0 0.0
    %1398 = vmatprep.subr.mxu0 0.0
    %1399 = vmatpush1.msra.mxu0 0.0
    %1400 = vmatprep.subr.mxu0 0.0
    %1401 = vmatpush1.msra.mxu0 0.0
    %1402 = vmatprep.subr.mxu0 0.0
    %1403 = vmatpush1.msra.mxu0 0.0
    %1404 = vmatprep.subr.mxu0 0.0
    %1405 = vmatpush1.msra.mxu0 0.0
    %1406 = vmatprep.subr.mxu0 0.0
    %1407 = vmatpush1.msra.mxu0 0.0
    %1408 = vmatprep.subr.mxu0 0.0
    %1409 = vmatpush1.msra.mxu0 0.0
    %1410 = vmatprep.subr.mxu0 0.0
    %1411 = vmatpush1.msra.mxu0 0.0
    %1412 = vmatprep.subr.mxu0 0.0
    %1413 = vmatpush1.msra.mxu0 0.0
    %1414 = vmatprep.subr.mxu0 0.0
    %1415 = vmatpush1.msra.mxu0 0.0
    %1416 = vmatprep.subr.mxu0 0.0
    %1417 = vmatpush1.msra.mxu0 0.0
    %1418 = vmatprep.subr.mxu0 0.0
    %1419 = vmatpush1.msra.mxu0 0.0
    %1420 = vmatprep.subr.mxu0 0.0
    %1421 = vmatpush1.msra.mxu0 0.0
    %1422 = vmatprep.subr.mxu0 0.0
    %1423 = vmatpush1.msra.mxu0 0.0
    %1424 = vmatprep.subr.mxu0 0.0
    %1425 = vmatpush1.msra.mxu0 0.0
    %1426 = vmatprep.subr.mxu0 0.0
    %1427 = vmatpush1.msra.mxu0 0.0
    %1428 = vmatprep.subr.mxu0 0.0
    %1429 = vmatpush1.msra.mxu0 0.0
    %1430 = vmatprep.subr.mxu0 0.0
    %1431 = vmatpush1.msra.mxu0 0.0
    %1432 = vmatprep.mubr.f32.mxu0 0.0
    %1433 = vmatmul.mubr.f32.gmra.mrb[0].mxu0 %v1296
    %v1434 = vpop.f32.mrb[0].mxu0
    %v1435 = vadd.f32 0.0, %v1434
    %v1436 = vpop.f32.mrb[0].mxu0
    %1437 = vdwg.mxu0
    %1438 = vmatprep.subr.mxu0 0.0
    %1439 = vmatpush1.msra.mxu0 %v824
    %1440 = vmatprep.subr.mxu0 0.0
    %1441 = vmatpush1.msra.mxu0 %v825
    %1442 = vmatprep.subr.mxu0 0.0
    %1443 = vmatpush1.msra.mxu0 0.0
    %1444 = vmatprep.subr.mxu0 0.0
    %1445 = vmatpush1.msra.mxu0 0.0
    %1446 = vmatprep.subr.mxu0 0.0
    %1447 = vmatpush1.msra.mxu0 0.0
    %1448 = vmatprep.subr.mxu0 0.0
    %1449 = vmatpush1.msra.mxu0 0.0
    %1450 = vmatprep.subr.mxu0 0.0
    %1451 = vmatpush1.msra.mxu0 0.0
    %1452 = vmatprep.subr.mxu0 0.0
    %1453 = vmatpush1.msra.mxu0 0.0
    %1454 = vmatprep.subr.mxu0 0.0
    %1455 = vmatpush1.msra.mxu0 0.0
    %1456 = vmatprep.subr.mxu0 0.0
    %1457 = vmatpush1.msra.mxu0 0.0
    %1458 = vmatprep.subr.mxu0 0.0
    %1459 = vmatpush1.msra.mxu0 0.0
    %1460 = vmatprep.subr.mxu0 0.0
    %1461 = vmatpush1.msra.mxu0 0.0
    %1462 = vmatprep.subr.mxu0 0.0
    %1463 = vmatpush1.msra.mxu0 0.0
    %1464 = vmatprep.subr.mxu0 0.0
    %1465 = vmatpush1.msra.mxu0 0.0
    %1466 = vmatprep.subr.mxu0 0.0
    %1467 = vmatpush1.msra.mxu0 0.0
    %1468 = vmatprep.subr.mxu0 0.0
    %1469 = vmatpush1.msra.mxu0 0.0
    %1470 = vmatprep.subr.mxu0 0.0
    %1471 = vmatpush1.msra.mxu0 0.0
    %1472 = vmatprep.subr.mxu0 0.0
    %1473 = vmatpush1.msra.mxu0 0.0
    %1474 = vmatprep.subr.mxu0 0.0
    %1475 = vmatpush1.msra.mxu0 0.0
    %1476 = vmatprep.subr.mxu0 0.0
    %1477 = vmatpush1.msra.mxu0 0.0
    %1478 = vmatprep.subr.mxu0 0.0
    %1479 = vmatpush1.msra.mxu0 0.0
    %1480 = vmatprep.subr.mxu0 0.0
    %1481 = vmatpush1.msra.mxu0 0.0
    %1482 = vmatprep.subr.mxu0 0.0
    %1483 = vmatpush1.msra.mxu0 0.0
    %1484 = vmatprep.subr.mxu0 0.0
    %1485 = vmatpush1.msra.mxu0 0.0
    %1486 = vmatprep.subr.mxu0 0.0
    %1487 = vmatpush1.msra.mxu0 0.0
    %1488 = vmatprep.subr.mxu0 0.0
    %1489 = vmatpush1.msra.mxu0 0.0
    %1490 = vmatprep.subr.mxu0 0.0
    %1491 = vmatpush1.msra.mxu0 0.0
    %1492 = vmatprep.subr.mxu0 0.0
    %1493 = vmatpush1.msra.mxu0 0.0
    %1494 = vmatprep.subr.mxu0 0.0
    %1495 = vmatpush1.msra.mxu0 0.0
    %1496 = vmatprep.subr.mxu0 0.0
    %1497 = vmatpush1.msra.mxu0 0.0
    %1498 = vmatprep.subr.mxu0 0.0
    %1499 = vmatpush1.msra.mxu0 0.0
    %1500 = vmatprep.subr.mxu0 0.0
    %1501 = vmatpush1.msra.mxu0 0.0
    %1502 = vmatprep.mubr.f32.mxu0 0.0
    %1503 = vmatmul.mubr.f32.gmra.mrb[0].mxu0 %v1296
    %v1504 = vpop.f32.mrb[0].mxu0
    %v1505 = vadd.f32 %v832, %v1504
    %v1506 = vpop.f32.mrb[0].mxu0
    %1507 = vdwg.mxu0
    %v1509 = vrot.slane %v1365, 7
    %v1511 = vadd.f32 %v909, %v1509
    %v1512 = vxor.u32 %v1511, 2147483648
    %v1513 = vmul.f32 %v1512, 1.442695
    %v1514 = vpow.pop %v1513
    %v1515 = vadd.f32 %v1514, 1.0
    %v1516 = vrcp.pop %v1515
    %v1517 = vmul.f32 1.0, %v1516
    %v1519 = vrot.slane %v1435, 7
    %v1521 = vadd.f32 %v985, %v1519
    %v1522 = vxor.u32 %v1521, 2147483648
    %v1523 = vmul.f32 %v1522, 1.442695
    %v1524 = vpow.pop %v1523
    %v1525 = vadd.f32 %v1524, 1.0
    %v1526 = vrcp.pop %v1525
    %v1527 = vmul.f32 1.0, %v1526
    %v1529 = vrot.slane %v1505, 7
    %v1531 = vmul.f32 %v1517, %v1529
    %v1532 = vadd.f32 %v1061, %v1531
    %v1533 = vtanh.pop %v1532
    %v1534 = vsub.f32 1.0, %v1527
    %v1535 = vmul.f32 %v1534, %v1533
    %v1536 = vrot.slane %v1294, 7
    %v1538 = vmul.f32 %v1527, %v1536
    %v1539 = vadd.f32 %v1535, %v1538
    %v1540 = vsel %vm808, %v1294, %v1539
    %v1541 = vld [vmem:[%s1] sm:$0x3]
    %v1542 = vld [vmem:[%s8] sm:$0xff]
    %v1543 = vld [vmem:[%s9] sm:$0x1]
    %v1545 = vlaneseq
    %v1546 = vshrl.u32 %v1545, 7
    %v1547 = vsub.s32 0, %v1546
    %v1548 = vrot.slane %v1543, %v1547
    %v1551 = vsel %vm102, %v1541, 0
    %1553 = vmatprep.subr.mxu0 0.0
    %1554 = vmatpush1.msra.mxu0 %v1542
    %1555 = vmatprep.subr.mxu0 0.0
    %1556 = vmatpush1.msra.mxu0 0.0
    %1557 = vmatprep.subr.mxu0 0.0
    %1558 = vmatpush1.msra.mxu0 0.0
    %1559 = vmatprep.subr.mxu0 0.0
    %1560 = vmatpush1.msra.mxu0 0.0
    %1561 = vmatprep.subr.mxu0 0.0
    %1562 = vmatpush1.msra.mxu0 0.0
    %1563 = vmatprep.subr.mxu0 0.0
    %1564 = vmatpush1.msra.mxu0 0.0
    %1565 = vmatprep.subr.mxu0 0.0
    %1566 = vmatpush1.msra.mxu0 0.0
    %1567 = vmatprep.subr.mxu0 0.0
    %1568 = vmatpush1.msra.mxu0 0.0
    %1569 = vmatprep.subr.mxu0 0.0
    %1570 = vmatpush1.msra.mxu0 0.0
    %1571 = vmatprep.subr.mxu0 0.0
    %1572 = vmatpush1.msra.mxu0 0.0
    %1573 = vmatprep.subr.mxu0 0.0
    %1574 = vmatpush1.msra.mxu0 0.0
    %1575 = vmatprep.subr.mxu0 0.0
    %1576 = vmatpush1.msra.mxu0 0.0
    %1577 = vmatprep.subr.mxu0 0.0
    %1578 = vmatpush1.msra.mxu0 0.0
    %1579 = vmatprep.subr.mxu0 0.0
    %1580 = vmatpush1.msra.mxu0 0.0
    %1581 = vmatprep.subr.mxu0 0.0
    %1582 = vmatpush1.msra.mxu0 0.0
    %1583 = vmatprep.subr.mxu0 0.0
    %1584 = vmatpush1.msra.mxu0 0.0
    %1585 = vmatprep.subr.mxu0 0.0
    %1586 = vmatpush1.msra.mxu0 0.0
    %1587 = vmatprep.subr.mxu0 0.0
    %1588 = vmatpush1.msra.mxu0 0.0
    %1589 = vmatprep.subr.mxu0 0.0
    %1590 = vmatpush1.msra.mxu0 0.0
    %1591 = vmatprep.subr.mxu0 0.0
    %1592 = vmatpush1.msra.mxu0 0.0
    %1593 = vmatprep.subr.mxu0 0.0
    %1594 = vmatpush1.msra.mxu0 0.0
    %1595 = vmatprep.subr.mxu0 0.0
    %1596 = vmatpush1.msra.mxu0 0.0
    %1597 = vmatprep.subr.mxu0 0.0
    %1598 = vmatpush1.msra.mxu0 0.0
    %1599 = vmatprep.subr.mxu0 0.0
    %1600 = vmatpush1.msra.mxu0 0.0
    %1601 = vmatprep.subr.mxu0 0.0
    %1602 = vmatpush1.msra.mxu0 0.0
    %1603 = vmatprep.subr.mxu0 0.0
    %1604 = vmatpush1.msra.mxu0 0.0
    %1605 = vmatprep.subr.mxu0 0.0
    %1606 = vmatpush1.msra.mxu0 0.0
    %1607 = vmatprep.subr.mxu0 0.0
    %1608 = vmatpush1.msra.mxu0 0.0
    %1609 = vmatprep.subr.mxu0 0.0
    %1610 = vmatpush1.msra.mxu0 0.0
    %1611 = vmatprep.subr.mxu0 0.0
    %1612 = vmatpush1.msra.mxu0 0.0
    %1613 = vmatprep.subr.mxu0 0.0
    %1614 = vmatpush1.msra.mxu0 0.0
    %1615 = vmatprep.subr.mxu0 0.0
    %1616 = vmatpush1.msra.mxu0 0.0
    %1617 = vmatprep.mubr.f32.mxu0 0.0
    %1618 = vmatmul.mubr.f32.gmra.mrb[0].mxu0 %v1551
    %v1619 = vpop.f32.mrb[0].mxu0
    %v1620 = vadd.f32 %v1548, %v1619
    %v1621 = vpop.f32.mrb[0].mxu0
    %1622 = vdwg.mxu0
    %v1623 = vmax.f32 %v1620, 0.0
    %v1624 = vld [vmem:[%s10] sm:$0xff]
    %v1625 = vld [vmem:[%s10 + $0x8] sm:$0xff]
    %v1626 = vld [vmem:[%s10 + $0x10] sm:$0xff]
    %v1627 = vld [vmem:[%s10 + $0x18] sm:$0xff]
    %v1628 = vld [vmem:[%s11] sm:$0x1]
    %v1630 = vlaneseq
    %v1631 = vshrl.u32 %v1630, 7
    %v1632 = vsub.s32 0, %v1631
    %v1633 = vrot.slane %v1628, %v1632
    %vm1635 = vcmask 261120
    %v1637 = vsel %vm1635, %v1623, 0
    %1639 = vmatprep.subr.mxu0 0.0
    %1640 = vmatpush1.msra.mxu0 %v1624
    %1641 = vmatprep.subr.mxu0 0.0
    %1642 = vmatpush1.msra.mxu0 %v1625
    %1643 = vmatprep.subr.mxu0 0.0
    %1644 = vmatpush1.msra.mxu0 %v1626
    %1645 = vmatprep.subr.mxu0 0.0
    %1646 = vmatpush1.msra.mxu0 %v1627
    %1647 = vmatprep.subr.mxu0 0.0
    %1648 = vmatpush1.msra.mxu0 0.0
    %1649 = vmatprep.subr.mxu0 0.0
    %1650 = vmatpush1.msra.mxu0 0.0
    %1651 = vmatprep.subr.mxu0 0.0
    %1652 = vmatpush1.msra.mxu0 0.0
    %1653 = vmatprep.subr.mxu0 0.0
    %1654 = vmatpush1.msra.mxu0 0.0
    %1655 = vmatprep.subr.mxu0 0.0
    %1656 = vmatpush1.msra.mxu0 0.0
    %1657 = vmatprep.subr.mxu0 0.0
    %1658 = vmatpush1.msra.mxu0 0.0
    %1659 = vmatprep.subr.mxu0 0.0
    %1660 = vmatpush1.msra.mxu0 0.0
    %1661 = vmatprep.subr.mxu0 0.0
    %1662 = vmatpush1.msra.mxu0 0.0
    %1663 = vmatprep.subr.mxu0 0.0
    %1664 = vmatpush1.msra.mxu0 0.0
    %1665 = vmatprep.subr.mxu0 0.0
    %1666 = vmatpush1.msra.mxu0 0.0
    %1667 = vmatprep.subr.mxu0 0.0
    %1668 = vmatpush1.msra.mxu0 0.0
    %1669 = vmatprep.subr.mxu0 0.0
    %1670 = vmatpush1.msra.mxu0 0.0
    %1671 = vmatprep.subr.mxu0 0.0
    %1672 = vmatpush1.msra.mxu0 0.0
    %1673 = vmatprep.subr.mxu0 0.0
    %1674 = vmatpush1.msra.mxu0 0.0
    %1675 = vmatprep.subr.mxu0 0.0
    %1676 = vmatpush1.msra.mxu0 0.0
    %1677 = vmatprep.subr.mxu0 0.0
    %1678 = vmatpush1.msra.mxu0 0.0
    %1679 = vmatprep.subr.mxu0 0.0
    %1680 = vmatpush1.msra.mxu0 0.0
    %1681 = vmatprep.subr.mxu0 0.0
    %1682 = vmatpush1.msra.mxu0 0.0
    %1683 = vmatprep.subr.mxu0 0.0
    %1684 = vmatpush1.msra.mxu0 0.0
    %1685 = vmatprep.subr.mxu0 0.0
    %1686 = vmatpush1.msra.mxu0 0.0
    %1687 = vmatprep.subr.mxu0 0.0
    %1688 = vmatpush1.msra.mxu0 0.0
    %1689 = vmatprep.subr.mxu0 0.0
    %1690 = vmatpush1.msra.mxu0 0.0
    %1691 = vmatprep.subr.mxu0 0.0
    %1692 = vmatpush1.msra.mxu0 0.0
    %1693 = vmatprep.subr.mxu0 0.0
    %1694 = vmatpush1.msra.mxu0 0.0
    %1695 = vmatprep.subr.mxu0 0.0
    %1696 = vmatpush1.msra.mxu0 0.0
    %1697 = vmatprep.subr.mxu0 0.0
    %1698 = vmatpush1.msra.mxu0 0.0
    %1699 = vmatprep.subr.mxu0 0.0
    %1700 = vmatpush1.msra.mxu0 0.0
    %1701 = vmatprep.subr.mxu0 0.0
    %1702 = vmatpush1.msra.mxu0 0.0
    %1703 = vmatprep.mubr.f32.mxu0 0.0
    %1704 = vmatmul.mubr.f32.gmra.mrb[0].mxu0 %v1637
    %v1705 = vpop.f32.mrb[0].mxu0
    %v1706 = vadd.f32 %v1633, %v1705
    %v1707 = vpop.f32.mrb[0].mxu0
    %1708 = vdwg.mxu0
    %v1709 = vmax.f32 %v1706, 0.0
    %v1710 = vld [vmem:[%s12] sm:$0xff]
    %v1711 = vld [vmem:[%s12 + $0x8] sm:$0xff]
    %v1712 = vld [vmem:[%s12 + $0x10] sm:$0xff]
    %v1713 = vld [vmem:[%s12 + $0x18] sm:$0xff]
    %v1714 = vld [vmem:[%s13] sm:$0x1]
    %v1716 = vlaneseq
    %v1717 = vshrl.u32 %v1716, 7
    %v1718 = vsub.s32 0, %v1717
    %v1719 = vrot.slane %v1714, %v1718
    %v1722 = vsel %vm1635, %v1709, 0
    %1724 = vmatprep.subr.mxu0 0.0
    %1725 = vmatpush1.msra.mxu0 %v1710
    %1726 = vmatprep.subr.mxu0 0.0
    %1727 = vmatpush1.msra.mxu0 %v1711
    %1728 = vmatprep.subr.mxu0 0.0
    %1729 = vmatpush1.msra.mxu0 %v1712
    %1730 = vmatprep.subr.mxu0 0.0
    %1731 = vmatpush1.msra.mxu0 %v1713
    %1732 = vmatprep.subr.mxu0 0.0
    %1733 = vmatpush1.msra.mxu0 0.0
    %1734 = vmatprep.subr.mxu0 0.0
    %1735 = vmatpush1.msra.mxu0 0.0
    %1736 = vmatprep.subr.mxu0 0.0
    %1737 = vmatpush1.msra.mxu0 0.0
    %1738 = vmatprep.subr.mxu0 0.0
    %1739 = vmatpush1.msra.mxu0 0.0
    %1740 = vmatprep.subr.mxu0 0.0
    %1741 = vmatpush1.msra.mxu0 0.0
    %1742 = vmatprep.subr.mxu0 0.0
    %1743 = vmatpush1.msra.mxu0 0.0
    %1744 = vmatprep.subr.mxu0 0.0
    %1745 = vmatpush1.msra.mxu0 0.0
    %1746 = vmatprep.subr.mxu0 0.0
    %1747 = vmatpush1.msra.mxu0 0.0
    %1748 = vmatprep.subr.mxu0 0.0
    %1749 = vmatpush1.msra.mxu0 0.0
    %1750 = vmatprep.subr.mxu0 0.0
    %1751 = vmatpush1.msra.mxu0 0.0
    %1752 = vmatprep.subr.mxu0 0.0
    %1753 = vmatpush1.msra.mxu0 0.0
    %1754 = vmatprep.subr.mxu0 0.0
    %1755 = vmatpush1.msra.mxu0 0.0
    %1756 = vmatprep.subr.mxu0 0.0
    %1757 = vmatpush1.msra.mxu0 0.0
    %1758 = vmatprep.subr.mxu0 0.0
    %1759 = vmatpush1.msra.mxu0 0.0
    %1760 = vmatprep.subr.mxu0 0.0
    %1761 = vmatpush1.msra.mxu0 0.0
    %1762 = vmatprep.subr.mxu0 0.0
    %1763 = vmatpush1.msra.mxu0 0.0
    %1764 = vmatprep.subr.mxu0 0.0
    %1765 = vmatpush1.msra.mxu0 0.0
    %1766 = vmatprep.subr.mxu0 0.0
    %1767 = vmatpush1.msra.mxu0 0.0
    %1768 = vmatprep.subr.mxu0 0.0
    %1769 = vmatpush1.msra.mxu0 0.0
    %1770 = vmatprep.subr.mxu0 0.0
    %1771 = vmatpush1.msra.mxu0 0.0
    %1772 = vmatprep.subr.mxu0 0.0
    %1773 = vmatpush1.msra.mxu0 0.0
    %1774 = vmatprep.subr.mxu0 0.0
    %1775 = vmatpush1.msra.mxu0 0.0
    %1776 = vmatprep.subr.mxu0 0.0
    %1777 = vmatpush1.msra.mxu0 0.0
    %1778 = vmatprep.subr.mxu0 0.0
    %1779 = vmatpush1.msra.mxu0 0.0
    %1780 = vmatprep.subr.mxu0 0.0
    %1781 = vmatpush1.msra.mxu0 0.0
    %1782 = vmatprep.subr.mxu0 0.0
    %1783 = vmatpush1.msra.mxu0 0.0
    %1784 = vmatprep.subr.mxu0 0.0
    %1785 = vmatpush1.msra.mxu0 0.0
    %1786 = vmatprep.subr.mxu0 0.0
    %1787 = vmatpush1.msra.mxu0 0.0
    %1788 = vmatprep.mubr.f32.mxu0 0.0
    %1789 = vmatmul.mubr.f32.gmra.mrb[0].mxu0 %v1722
    %v1790 = vpop.f32.mrb[0].mxu0
    %v1791 = vadd.f32 %v1719, %v1790
    %v1792 = vpop.f32.mrb[0].mxu0
    %1793 = vdwg.mxu0
    %v1794 = vld [vmem:[%s14] sm:$0xff]
    %v1795 = vld [vmem:[%s14 + $0x8] sm:$0xff]
    %v1796 = vld [vmem:[%s15] sm:$0xff]
    %v1797 = vld [vmem:[%s15 + $0x8] sm:$0xff]
    %v1799 = vsel %vm328, %v1791, 0
    %1801 = vmatprep.subr.mxu0 0.0
    %1802 = vmatpush1.msra.mxu0 %v1796
    %1803 = vmatprep.subr.mxu0 0.0
    %1804 = vmatpush1.msra.mxu0 %v1797
    %1805 = vmatprep.subr.mxu0 0.0
    %1806 = vmatpush1.msra.mxu0 0.0
    %1807 = vmatprep.subr.mxu0 0.0
    %1808 = vmatpush1.msra.mxu0 0.0
    %1809 = vmatprep.subr.mxu0 0.0
    %1810 = vmatpush1.msra.mxu0 0.0
    %1811 = vmatprep.subr.mxu0 0.0
    %1812 = vmatpush1.msra.mxu0 0.0
    %1813 = vmatprep.subr.mxu0 0.0
    %1814 = vmatpush1.msra.mxu0 0.0
    %1815 = vmatprep.subr.mxu0 0.0
    %1816 = vmatpush1.msra.mxu0 0.0
    %1817 = vmatprep.subr.mxu0 0.0
    %1818 = vmatpush1.msra.mxu0 0.0
    %1819 = vmatprep.subr.mxu0 0.0
    %1820 = vmatpush1.msra.mxu0 0.0
    %1821 = vmatprep.subr.mxu0 0.0
    %1822 = vmatpush1.msra.mxu0 0.0
    %1823 = vmatprep.subr.mxu0 0.0
    %1824 = vmatpush1.msra.mxu0 0.0
    %1825 = vmatprep.subr.mxu0 0.0
    %1826 = vmatpush1.msra.mxu0 0.0
    %1827 = vmatprep.subr.mxu0 0.0
    %1828 = vmatpush1.msra.mxu0 0.0
    %1829 = vmatprep.subr.mxu0 0.0
    %1830 = vmatpush1.msra.mxu0 0.0
    %1831 = vmatprep.subr.mxu0 0.0
    %1832 = vmatpush1.msra.mxu0 0.0
    %1833 = vmatprep.subr.mxu0 0.0
    %1834 = vmatpush1.msra.mxu0 0.0
    %1835 = vmatprep.subr.mxu0 0.0
    %1836 = vmatpush1.msra.mxu0 0.0
    %1837 = vmatprep.subr.mxu0 0.0
    %1838 = vmatpush1.msra.mxu0 0.0
    %1839 = vmatprep.subr.mxu0 0.0
    %1840 = vmatpush1.msra.mxu0 0.0
    %1841 = vmatprep.subr.mxu0 0.0
    %1842 = vmatpush1.msra.mxu0 0.0
    %1843 = vmatprep.subr.mxu0 0.0
    %1844 = vmatpush1.msra.mxu0 0.0
    %1845 = vmatprep.subr.mxu0 0.0
    %1846 = vmatpush1.msra.mxu0 0.0
    %1847 = vmatprep.subr.mxu0 0.0
    %1848 = vmatpush1.msra.mxu0 0.0
    %1849 = vmatprep.subr.mxu0 0.0
    %1850 = vmatpush1.msra.mxu0 0.0
    %1851 = vmatprep.subr.mxu0 0.0
    %1852 = vmatpush1.msra.mxu0 0.0
    %1853 = vmatprep.subr.mxu0 0.0
    %1854 = vmatpush1.msra.mxu0 0.0
    %1855 = vmatprep.subr.mxu0 0.0
    %1856 = vmatpush1.msra.mxu0 0.0
    %1857 = vmatprep.subr.mxu0 0.0
    %1858 = vmatpush1.msra.mxu0 0.0
    %1859 = vmatprep.subr.mxu0 0.0
    %1860 = vmatpush1.msra.mxu0 0.0
    %1861 = vmatprep.subr.mxu0 0.0
    %1862 = vmatpush1.msra.mxu0 0.0
    %1863 = vmatprep.subr.mxu0 0.0
    %1864 = vmatpush1.msra.mxu0 0.0
    %1865 = vmatprep.mubr.f32.mxu0 0.0
    %1866 = vmatmul.mubr.f32.gmra.mrb[0].mxu0 %v1799
    %v1867 = vpop.f32.mrb[0].mxu0
    %v1868 = vadd.f32 0.0, %v1867
    %v1869 = vpop.f32.mrb[0].mxu0
    %1870 = vdwg.mxu0
    %v1872 = vsel %vm328, %v1540, 0
    %1874 = vmatprep.subr.mxu0 0.0
    %1875 = vmatpush1.msra.mxu0 %v1794
    %1876 = vmatprep.subr.mxu0 0.0
    %1877 = vmatpush1.msra.mxu0 %v1795
    %1878 = vmatprep.subr.mxu0 0.0
    %1879 = vmatpush1.msra.mxu0 0.0
    %1880 = vmatprep.subr.mxu0 0.0
    %1881 = vmatpush1.msra.mxu0 0.0
    %1882 = vmatprep.subr.mxu0 0.0
    %1883 = vmatpush1.msra.mxu0 0.0
    %1884 = vmatprep.subr.mxu0 0.0
    %1885 = vmatpush1.msra.mxu0 0.0
    %1886 = vmatprep.subr.mxu0 0.0
    %1887 = vmatpush1.msra.mxu0 0.0
    %1888 = vmatprep.subr.mxu0 0.0
    %1889 = vmatpush1.msra.mxu0 0.0
    %1890 = vmatprep.subr.mxu0 0.0
    %1891 = vmatpush1.msra.mxu0 0.0
    %1892 = vmatprep.subr.mxu0 0.0
    %1893 = vmatpush1.msra.mxu0 0.0
    %1894 = vmatprep.subr.mxu0 0.0
    %1895 = vmatpush1.msra.mxu0 0.0
    %1896 = vmatprep.subr.mxu0 0.0
    %1897 = vmatpush1.msra.mxu0 0.0
    %1898 = vmatprep.subr.mxu0 0.0
    %1899 = vmatpush1.msra.mxu0 0.0
    %1900 = vmatprep.subr.mxu0 0.0
    %1901 = vmatpush1.msra.mxu0 0.0
    %1902 = vmatprep.subr.mxu0 0.0
    %1903 = vmatpush1.msra.mxu0 0.0
    %1904 = vmatprep.subr.mxu0 0.0
    %1905 = vmatpush1.msra.mxu0 0.0
    %1906 = vmatprep.subr.mxu0 0.0
    %1907 = vmatpush1.msra.mxu0 0.0
    %1908 = vmatprep.subr.mxu0 0.0
    %1909 = vmatpush1.msra.mxu0 0.0
    %1910 = vmatprep.subr.mxu0 0.0
    %1911 = vmatpush1.msra.mxu0 0.0
    %1912 = vmatprep.subr.mxu0 0.0
    %1913 = vmatpush1.msra.mxu0 0.0
    %1914 = vmatprep.subr.mxu0 0.0
    %1915 = vmatpush1.msra.mxu0 0.0
    %1916 = vmatprep.subr.mxu0 0.0
    %1917 = vmatpush1.msra.mxu0 0.0
    %1918 = vmatprep.subr.mxu0 0.0
    %1919 = vmatpush1.msra.mxu0 0.0
    %1920 = vmatprep.subr.mxu0 0.0
    %1921 = vmatpush1.msra.mxu0 0.0
    %1922 = vmatprep.subr.mxu0 0.0
    %1923 = vmatpush1.msra.mxu0 0.0
    %1924 = vmatprep.subr.mxu0 0.0
    %1925 = vmatpush1.msra.mxu0 0.0
    %1926 = vmatprep.subr.mxu0 0.0
    %1927 = vmatpush1.msra.mxu0 0.0
    %1928 = vmatprep.subr.mxu0 0.0
    %1929 = vmatpush1.msra.mxu0 0.0
    %1930 = vmatprep.subr.mxu0 0.0
    %1931 = vmatpush1.msra.mxu0 0.0
    %1932 = vmatprep.subr.mxu0 0.0
    %1933 = vmatpush1.msra.mxu0 0.0
    %1934 = vmatprep.subr.mxu0 0.0
    %1935 = vmatpush1.msra.mxu0 0.0
    %1936 = vmatprep.subr.mxu0 0.0
    %1937 = vmatpush1.msra.mxu0 0.0
    %1938 = vmatprep.mubr.f32.mxu0 0.0
    %1939 = vmatmul.mubr.f32.gmra.mrb[0].mxu0 %v1872
    %v1940 = vpop.f32.mrb[0].mxu0
    %v1941 = vadd.f32 %v1868, %v1940
    %v1942 = vpop.f32.mrb[0].mxu0
    %1943 = vdwg.mxu0
    %v1944 = vld [vmem:[%s16] sm:$0x1]
    %v1946 = vlaneseq
    %v1947 = vshrl.u32 %v1946, 7
    %v1948 = vsub.s32 0, %v1947
    %v1949 = vrot.slane %v1944, %v1948
    %v1951 = vadd.f32 %v1941, %v1949
    %v1952 = vmax.f32 %v1951, 0.0
    %v1953 = vld [vmem:[%s17] sm:$0xff]
    %v1954 = vld [vmem:[%s17 + $0x8] sm:$0xff]
    %v1955 = vld [vmem:[%s17 + $0x10] sm:$0xff]
    %v1956 = vld [vmem:[%s17 + $0x18] sm:$0xff]
    %v1957 = vld [vmem:[%s18] sm:$0x1]
    %v1959 = vlaneseq
    %v1960 = vshrl.u32 %v1959, 7
    %v1961 = vsub.s32 0, %v1960
    %v1962 = vrot.slane %v1957, %v1961
    %v1965 = vsel %vm1635, %v1952, 0
    %1967 = vmatprep.subr.mxu0 0.0
    %1968 = vmatpush1.msra.mxu0 %v1953
    %1969 = vmatprep.subr.mxu0 0.0
    %1970 = vmatpush1.msra.mxu0 %v1954
    %1971 = vmatprep.subr.mxu0 0.0
    %1972 = vmatpush1.msra.mxu0 %v1955
    %1973 = vmatprep.subr.mxu0 0.0
    %1974 = vmatpush1.msra.mxu0 %v1956
    %1975 = vmatprep.subr.mxu0 0.0
    %1976 = vmatpush1.msra.mxu0 0.0
    %1977 = vmatprep.subr.mxu0 0.0
    %1978 = vmatpush1.msra.mxu0 0.0
    %1979 = vmatprep.subr.mxu0 0.0
    %1980 = vmatpush1.msra.mxu0 0.0
    %1981 = vmatprep.subr.mxu0 0.0
    %1982 = vmatpush1.msra.mxu0 0.0
    %1983 = vmatprep.subr.mxu0 0.0
    %1984 = vmatpush1.msra.mxu0 0.0
    %1985 = vmatprep.subr.mxu0 0.0
    %1986 = vmatpush1.msra.mxu0 0.0
    %1987 = vmatprep.subr.mxu0 0.0
    %1988 = vmatpush1.msra.mxu0 0.0
    %1989 = vmatprep.subr.mxu0 0.0
    %1990 = vmatpush1.msra.mxu0 0.0
    %1991 = vmatprep.subr.mxu0 0.0
    %1992 = vmatpush1.msra.mxu0 0.0
    %1993 = vmatprep.subr.mxu0 0.0
    %1994 = vmatpush1.msra.mxu0 0.0
    %1995 = vmatprep.subr.mxu0 0.0
    %1996 = vmatpush1.msra.mxu0 0.0
    %1997 = vmatprep.subr.mxu0 0.0
    %1998 = vmatpush1.msra.mxu0 0.0
    %1999 = vmatprep.subr.mxu0 0.0
    %2000 = vmatpush1.msra.mxu0 0.0
    %2001 = vmatprep.subr.mxu0 0.0
    %2002 = vmatpush1.msra.mxu0 0.0
    %2003 = vmatprep.subr.mxu0 0.0
    %2004 = vmatpush1.msra.mxu0 0.0
    %2005 = vmatprep.subr.mxu0 0.0
    %2006 = vmatpush1.msra.mxu0 0.0
    %2007 = vmatprep.subr.mxu0 0.0
    %2008 = vmatpush1.msra.mxu0 0.0
    %2009 = vmatprep.subr.mxu0 0.0
    %2010 = vmatpush1.msra.mxu0 0.0
    %2011 = vmatprep.subr.mxu0 0.0
    %2012 = vmatpush1.msra.mxu0 0.0
    %2013 = vmatprep.subr.mxu0 0.0
    %2014 = vmatpush1.msra.mxu0 0.0
    %2015 = vmatprep.subr.mxu0 0.0
    %2016 = vmatpush1.msra.mxu0 0.0
    %2017 = vmatprep.subr.mxu0 0.0
    %2018 = vmatpush1.msra.mxu0 0.0
    %2019 = vmatprep.subr.mxu0 0.0
    %2020 = vmatpush1.msra.mxu0 0.0
    %2021 = vmatprep.subr.mxu0 0.0
    %2022 = vmatpush1.msra.mxu0 0.0
    %2023 = vmatprep.subr.mxu0 0.0
    %2024 = vmatpush1.msra.mxu0 0.0
    %2025 = vmatprep.subr.mxu0 0.0
    %2026 = vmatpush1.msra.mxu0 0.0
    %2027 = vmatprep.subr.mxu0 0.0
    %2028 = vmatpush1.msra.mxu0 0.0
    %2029 = vmatprep.subr.mxu0 0.0
    %2030 = vmatpush1.msra.mxu0 0.0
    %2031 = vmatprep.mubr.f32.mxu0 0.0
    %2032 = vmatmul.mubr.f32.gmra.mrb[0].mxu0 %v1965
    %v2033 = vpop.f32.mrb[0].mxu0
    %v2034 = vadd.f32 %v1962, %v2033
    %v2035 = vpop.f32.mrb[0].mxu0
    %2036 = vdwg.mxu0
    %v2037 = vmax.f32 %v2034, 0.0
    %v2038 = vld [vmem:[%s19] sm:$0xff]
    %v2039 = vld [vmem:[%s19 + $0x8] sm:$0xff]
    %v2040 = vld [vmem:[%s19 + $0x10] sm:$0xff]
    %v2041 = vld [vmem:[%s19 + $0x18] sm:$0xff]
    %v2042 = vld [vmem:[%s20] sm:$0x1]
    %v2044 = vlaneseq
    %v2045 = vshrl.u32 %v2044, 7
    %v2046 = vsub.s32 0, %v2045
    %v2047 = vrot.slane %v2042, %v2046
    %v2050 = vsel %vm1635, %v2037, 0
    %2052 = vmatprep.subr.mxu0 0.0
    %2053 = vmatpush1.msra.mxu0 %v2038
    %2054 = vmatprep.subr.mxu0 0.0
    %2055 = vmatpush1.msra.mxu0 %v2039
    %2056 = vmatprep.subr.mxu0 0.0
    %2057 = vmatpush1.msra.mxu0 %v2040
    %2058 = vmatprep.subr.mxu0 0.0
    %2059 = vmatpush1.msra.mxu0 %v2041
    %2060 = vmatprep.subr.mxu0 0.0
    %2061 = vmatpush1.msra.mxu0 0.0
    %2062 = vmatprep.subr.mxu0 0.0
    %2063 = vmatpush1.msra.mxu0 0.0
    %2064 = vmatprep.subr.mxu0 0.0
    %2065 = vmatpush1.msra.mxu0 0.0
    %2066 = vmatprep.subr.mxu0 0.0
    %2067 = vmatpush1.msra.mxu0 0.0
    %2068 = vmatprep.subr.mxu0 0.0
    %2069 = vmatpush1.msra.mxu0 0.0
    %2070 = vmatprep.subr.mxu0 0.0
    %2071 = vmatpush1.msra.mxu0 0.0
    %2072 = vmatprep.subr.mxu0 0.0
    %2073 = vmatpush1.msra.mxu0 0.0
    %2074 = vmatprep.subr.mxu0 0.0
    %2075 = vmatpush1.msra.mxu0 0.0
    %2076 = vmatprep.subr.mxu0 0.0
    %2077 = vmatpush1.msra.mxu0 0.0
    %2078 = vmatprep.subr.mxu0 0.0
    %2079 = vmatpush1.msra.mxu0 0.0
    %2080 = vmatprep.subr.mxu0 0.0
    %2081 = vmatpush1.msra.mxu0 0.0
    %2082 = vmatprep.subr.mxu0 0.0
    %2083 = vmatpush1.msra.mxu0 0.0
    %2084 = vmatprep.subr.mxu0 0.0
    %2085 = vmatpush1.msra.mxu0 0.0
    %2086 = vmatprep.subr.mxu0 0.0
    %2087 = vmatpush1.msra.mxu0 0.0
    %2088 = vmatprep.subr.mxu0 0.0
    %2089 = vmatpush1.msra.mxu0 0.0
    %2090 = vmatprep.subr.mxu0 0.0
    %2091 = vmatpush1.msra.mxu0 0.0
    %2092 = vmatprep.subr.mxu0 0.0
    %2093 = vmatpush1.msra.mxu0 0.0
    %2094 = vmatprep.subr.mxu0 0.0
    %2095 = vmatpush1.msra.mxu0 0.0
    %2096 = vmatprep.subr.mxu0 0.0
    %2097 = vmatpush1.msra.mxu0 0.0
    %2098 = vmatprep.subr.mxu0 0.0
    %2099 = vmatpush1.msra.mxu0 0.0
    %2100 = vmatprep.subr.mxu0 0.0
    %2101 = vmatpush1.msra.mxu0 0.0
    %2102 = vmatprep.subr.mxu0 0.0
    %2103 = vmatpush1.msra.mxu0 0.0
    %2104 = vmatprep.subr.mxu0 0.0
    %2105 = vmatpush1.msra.mxu0 0.0
    %2106 = vmatprep.subr.mxu0 0.0
    %2107 = vmatpush1.msra.mxu0 0.0
    %2108 = vmatprep.subr.mxu0 0.0
    %2109 = vmatpush1.msra.mxu0 0.0
    %2110 = vmatprep.subr.mxu0 0.0
    %2111 = vmatpush1.msra.mxu0 0.0
    %2112 = vmatprep.subr.mxu0 0.0
    %2113 = vmatpush1.msra.mxu0 0.0
    %2114 = vmatprep.subr.mxu0 0.0
    %2115 = vmatpush1.msra.mxu0 0.0
    %2116 = vmatprep.mubr.f32.mxu0 0.0
    %2117 = vmatmul.mubr.f32.gmra.mrb[0].mxu0 %v2050
    %v2118 = vpop.f32.mrb[0].mxu0
    %v2119 = vadd.f32 %v2047, %v2118
    %v2120 = vpop.f32.mrb[0].mxu0
    %2121 = vdwg.mxu0
    %v2122 = vmax.f32 %v2119, 0.0
    %v2123 = vld [vmem:[%s21] sm:$0xff]
    %v2124 = vld [vmem:[%s21 + $0x8] sm:$0xff]
    %v2125 = vld [vmem:[%s21 + $0x10] sm:$0xff]
    %v2126 = vld [vmem:[%s21 + $0x18] sm:$0xff]
    %v2127 = vld [vmem:[%s22] sm:$0x1]
    %v2129 = vlaneseq
    %v2130 = vshrl.u32 %v2129, 7
    %v2131 = vsub.s32 0, %v2130
    %v2132 = vrot.slane %v2127, %v2131
    %v2135 = vsel %vm1635, %v2122, 0
    %2137 = vmatprep.subr.mxu0 0.0
    %2138 = vmatpush1.msra.mxu0 %v2123
    %2139 = vmatprep.subr.mxu0 0.0
    %2140 = vmatpush1.msra.mxu0 %v2124
    %2141 = vmatprep.subr.mxu0 0.0
    %2142 = vmatpush1.msra.mxu0 %v2125
    %2143 = vmatprep.subr.mxu0 0.0
    %2144 = vmatpush1.msra.mxu0 %v2126
    %2145 = vmatprep.subr.mxu0 0.0
    %2146 = vmatpush1.msra.mxu0 0.0
    %2147 = vmatprep.subr.mxu0 0.0
    %2148 = vmatpush1.msra.mxu0 0.0
    %2149 = vmatprep.subr.mxu0 0.0
    %2150 = vmatpush1.msra.mxu0 0.0
    %2151 = vmatprep.subr.mxu0 0.0
    %2152 = vmatpush1.msra.mxu0 0.0
    %2153 = vmatprep.subr.mxu0 0.0
    %2154 = vmatpush1.msra.mxu0 0.0
    %2155 = vmatprep.subr.mxu0 0.0
    %2156 = vmatpush1.msra.mxu0 0.0
    %2157 = vmatprep.subr.mxu0 0.0
    %2158 = vmatpush1.msra.mxu0 0.0
    %2159 = vmatprep.subr.mxu0 0.0
    %2160 = vmatpush1.msra.mxu0 0.0
    %2161 = vmatprep.subr.mxu0 0.0
    %2162 = vmatpush1.msra.mxu0 0.0
    %2163 = vmatprep.subr.mxu0 0.0
    %2164 = vmatpush1.msra.mxu0 0.0
    %2165 = vmatprep.subr.mxu0 0.0
    %2166 = vmatpush1.msra.mxu0 0.0
    %2167 = vmatprep.subr.mxu0 0.0
    %2168 = vmatpush1.msra.mxu0 0.0
    %2169 = vmatprep.subr.mxu0 0.0
    %2170 = vmatpush1.msra.mxu0 0.0
    %2171 = vmatprep.subr.mxu0 0.0
    %2172 = vmatpush1.msra.mxu0 0.0
    %2173 = vmatprep.subr.mxu0 0.0
    %2174 = vmatpush1.msra.mxu0 0.0
    %2175 = vmatprep.subr.mxu0 0.0
    %2176 = vmatpush1.msra.mxu0 0.0
    %2177 = vmatprep.subr.mxu0 0.0
    %2178 = vmatpush1.msra.mxu0 0.0
    %2179 = vmatprep.subr.mxu0 0.0
    %2180 = vmatpush1.msra.mxu0 0.0
    %2181 = vmatprep.subr.mxu0 0.0
    %2182 = vmatpush1.msra.mxu0 0.0
    %2183 = vmatprep.subr.mxu0 0.0
    %2184 = vmatpush1.msra.mxu0 0.0
    %2185 = vmatprep.subr.mxu0 0.0
    %2186 = vmatpush1.msra.mxu0 0.0
    %2187 = vmatprep.subr.mxu0 0.0
    %2188 = vmatpush1.msra.mxu0 0.0
    %2189 = vmatprep.subr.mxu0 0.0
    %2190 = vmatpush1.msra.mxu0 0.0
    %2191 = vmatprep.subr.mxu0 0.0
    %2192 = vmatpush1.msra.mxu0 0.0
    %2193 = vmatprep.subr.mxu0 0.0
    %2194 = vmatpush1.msra.mxu0 0.0
    %2195 = vmatprep.subr.mxu0 0.0
    %2196 = vmatpush1.msra.mxu0 0.0
    %2197 = vmatprep.subr.mxu0 0.0
    %2198 = vmatpush1.msra.mxu0 0.0
    %2199 = vmatprep.subr.mxu0 0.0
    %2200 = vmatpush1.msra.mxu0 0.0
    %2201 = vmatprep.mubr.f32.mxu0 0.0
    %2202 = vmatmul.mubr.f32.gmra.mrb[0].mxu0 %v2135
    %v2203 = vpop.f32.mrb[0].mxu0
    %v2204 = vadd.f32 %v2132, %v2203
    %v2205 = vpop.f32.mrb[0].mxu0
    %2206 = vdwg.mxu0
    %vm2207 = vcmask 25600
    %2208 = vst.msk [vmem:[#allocation2] sm:$0x3] %vm2207, %v2204
    // Predicated region
    $region94: #{forward_pallas.1} parent=1 // pred_check
      _
    $region95: #{forward_pallas.1} parent=1 // pred_check_branch
      %2210 = sbr.rel (0) target = $region97
    $region96: #{forward_pallas.1} parent=1 // pred_region
      %s2212 = ssub.s32 32, 32
      %2213 = vsyncadd [#allocation3], %s2212
      %s2215 = sshll.u32 [#allocation2], 4
      %s2216 = int_to_ptr.vmem [resolvable:$true] %s2215
      %2218 = dma.vmem_to_hbm [thread:$0]  %s2216, 32, %s23, [#allocation3]
    $region97: #{forward_pallas.1} parent=1 // pred_fallthru
      _
    // Predicated region
    $region98: #{forward_pallas.1} parent=1 // pred_check
      _
    $region99: #{forward_pallas.1} parent=1 // pred_check_branch
      %2220 = sbr.rel (0) target = $region101
    $region100: #{forward_pallas.1} parent=1 // pred_region
      %2221 = dma.done [#allocation3], 32
    $region101: #{forward_pallas.1} parent=1 // pred_fallthru
      _
    %2222 = vsyncpa [#allocation3], 1

</llo_original>
